<compile_context>
chip_gen: v7x
topology: tpu7x:2x2x1
jax: 0.10.0
libtpu: 0.0.40
codegen_flags: <defaults>
</compile_context>

<pallas_src>
import functools

import jax
import jax.numpy as jnp
import numpy as np
from jax import lax
from jax.experimental import pallas as pl
from jax.experimental.pallas import tpu as pltpu


def _round_up(x, m):
    return ((x + m - 1) // m) * m


def _pick_row_tile(h, w, target_rows=512, max_rows=4096):
    """H-tile so that the matmul M = TH*W is ~target_rows (capped for VMEM)."""
    th = max(1, min(h, -(-target_rows // w)))
    while th > 1 and th * w > max_rows:
        th -= 1
    return th


# ----------------------------------------------------------------------------
# Kernel 1: conv H-tile = KH accumulated matmuls with K = KW*Cin, fused BN stats
# ----------------------------------------------------------------------------
def _conv_kernel(x_ref, w_ref, b_ref, o_ref, stats_ref, *, kh, th, w_out, h_valid):
    # grid = (N, GH), both "parallel".
    # x_ref     : (1, Hpp, W, KW*Cin) bf16  padded + KW-folded image, resident per n
    # w_ref     : (KH, KW*Cin, Coutp) bf16  full weight, resident for whole call
    # b_ref     : (1, Coutp) f32            conv bias (lane-padded)
    # o_ref     : (1, TH, W, Coutp) f32     output H-tile
    # stats_ref : (1, 1, 2, Coutp) f32      per-tile partial (sum, sumsq)
    ht = pl.program_id(1)
    row0 = ht * th

    # KH unrolled taps, each a single MXU matmul with K = KW*Cin, f32 accumulation.
    acc = jnp.dot(
        x_ref[0, pl.ds(row0, th), :, :].reshape(th * w_out, -1),
        w_ref[0],
        preferred_element_type=jnp.float32)
    for dy in range(1, kh):
        acc = acc + jnp.dot(
            x_ref[0, pl.ds(row0 + dy, th), :, :].reshape(th * w_out, -1),
            w_ref[dy],
            preferred_element_type=jnp.float32)

    out = (acc + b_ref[...]).reshape(th, w_out, -1)          # (TH, W, Coutp) f32
    o_ref[0] = out.astype(o_ref.dtype)

    # Fused BatchNorm partial statistics (mask rows past the true image height).
    hidx = lax.broadcasted_iota(jnp.int32, (th, w_out, 1), 0) + row0
    xo = jnp.where(hidx < h_valid, out, 0.0)
    s1 = jnp.sum(xo, axis=(0, 1)).reshape(1, -1)             # (1, Coutp)
    s2 = jnp.sum(xo * out, axis=(0, 1)).reshape(1, -1)       # (1, Coutp)
    stats_ref[0, 0, 0:1, :] = s1
    stats_ref[0, 0, 1:2, :] = s2


def _conv2d_same_bf16(x_nhwc, conv_w, conv_b, coutp, th):
    """Stride-1 'same' conv.  Returns (y, stats):
       y     : (N, GH*TH, W, coutp) f32 (rows >= H are padding)
       stats : (N, GH, 2, coutp)  f32 per-tile (sum, sumsq) over valid rows."""
    N, H, W, Cin = x_nhwc.shape
    Cout, _, KH, KW = conv_w.shape
    ph, pw = KH // 2, KW // 2
    gh = -(-H // th)
    h_pad = gh * th                      # output rows incl. tile padding
    hpp = h_pad + KH - 1                 # padded input rows needed
    kwc = KW * Cin

    # wrapper glue: zero-pad, KW-fold along channels (dx-major, ci-minor), bf16.
    xp = jnp.pad(x_nhwc, ((0, 0), (ph, ph + (h_pad - H)), (pw, pw), (0, 0)))
    xf = jnp.concatenate([xp[:, :, dx:dx + W, :] for dx in range(KW)], axis=-1)
    xf = xf.astype(jnp.bfloat16)                             # (N, hpp, W, KW*Cin)

    w_t = jnp.transpose(conv_w, (2, 3, 1, 0))                # (KH, KW, Cin, Cout)
    w_t = jnp.pad(w_t, ((0, 0), (0, 0), (0, 0), (0, coutp - Cout)))
    w2 = w_t.reshape(KH, kwc, coutp).astype(jnp.bfloat16)    # (KH, KW*Cin, coutp)
    b2 = jnp.pad(conv_b, (0, coutp - Cout)).astype(jnp.float32).reshape(1, coutp)

    return pl.pallas_call(
        functools.partial(_conv_kernel, kh=KH, th=th, w_out=W, h_valid=H),
        out_shape=(
            jax.ShapeDtypeStruct((N, h_pad, W, coutp), jnp.float32),
            jax.ShapeDtypeStruct((N, gh, 2, coutp), jnp.float32),
        ),
        grid_spec=pltpu.PrefetchScalarGridSpec(
            num_scalar_prefetch=0,
            grid=(N, gh),
            in_specs=[
                # whole padded/folded image per batch; constant in h -> resident
                pl.BlockSpec((1, hpp, W, kwc), lambda n, h: (n, 0, 0, 0)),
                # full weight, constant index_map -> fetched once
                pl.BlockSpec((KH, kwc, coutp), lambda n, h: (0, 0, 0)),
                pl.BlockSpec((1, coutp), lambda n, h: (0, 0)),
            ],
            out_specs=(
                pl.BlockSpec((1, th, W, coutp), lambda n, h: (n, h, 0, 0)),
                pl.BlockSpec((1, 1, 2, coutp), lambda n, h: (n, h, 0, 0)),
            ),
        ),
        compiler_params=pltpu.CompilerParams(
            dimension_semantics=("parallel", "parallel")),
    )(xf, w2, b2)


# ----------------------------------------------------------------------------
# Kernel 2: BN normalize (row-tiled, in place, precomputed scale/shift)
# ----------------------------------------------------------------------------
def _bn_norm_kernel(y_ref, scale_ref, shift_ref, o_ref):
    o_ref[...] = y_ref[...] * scale_ref[0] + shift_ref[0]


def _bn_apply(y, scale, shift, th):
    N, Hp, W, C = y.shape
    gh = Hp // th
    return pl.pallas_call(
        _bn_norm_kernel,
        out_shape=jax.ShapeDtypeStruct(y.shape, y.dtype),
        grid_spec=pltpu.PrefetchScalarGridSpec(
            num_scalar_prefetch=0,
            grid=(N, gh),
            in_specs=[
                pl.BlockSpec((1, th, W, C), lambda n, h: (n, h, 0, 0)),
                pl.BlockSpec((1, C), lambda n, h: (0, 0)),
                pl.BlockSpec((1, C), lambda n, h: (0, 0)),
            ],
            out_specs=pl.BlockSpec((1, th, W, C), lambda n, h: (n, h, 0, 0)),
        ),
        compiler_params=pltpu.CompilerParams(
            dimension_semantics=("parallel", "parallel")),
        input_output_aliases={0: 0},                          # normalize in place
    )(y, scale, shift)


# ----------------------------------------------------------------------------
# Public forward pass
# ----------------------------------------------------------------------------
def basic_conv2d(x_nchw, conv_w, conv_b, bn_gamma=None, bn_beta=None, *, eps=1e-5):
    """Forward of BasicConv2d (training-mode BN when bn_gamma is given).

    x_nchw : (N, Cin, H, W) f32 ; conv_w : (Cout, Cin, KH, KW) ; conv_b : (Cout,)
    bn_gamma, bn_beta : (Cout,) or None.  Returns (N, Cout, H, W) f32.
    """
    N, Cin, H, W = x_nchw.shape
    Cout, _, KH, KW = conv_w.shape
    assert KH % 2 == 1 and KW % 2 == 1, "odd kernel sizes only ('same' padding)"
    # lane-dense channels (on v6e/v7x, rounding to 256 when Cout >= 128 can
    # further fill the 256-wide MXU at the cost of extra HBM bytes)
    coutp = _round_up(Cout, 128)
    th = _pick_row_tile(H, W)

    x_nhwc = jnp.transpose(x_nchw, (0, 2, 3, 1)).astype(jnp.float32)  # wrapper glue
    y, stats = _conv2d_same_bf16(x_nhwc, conv_w, conv_b, coutp, th)

    if bn_gamma is not None:
        m = N * H * W
        s = jnp.sum(stats, axis=(0, 1))                      # tiny partials combine
        mean = s[0] / m
        var = s[1] / m - mean * mean                         # biased (PyTorch train fwd)
        inv = lax.rsqrt(var + eps)
        g = jnp.pad(bn_gamma, (0, coutp - Cout))             # padded gamma=0 -> scale=0
        b = jnp.pad(bn_beta, (0, coutp - Cout))
        scale = (g * inv).reshape(1, coutp)
        shift = (b - mean * g * inv).reshape(1, coutp)
        y = _bn_apply(y, scale, shift, th)

    y = y[:, :H, :, :Cout]                                   # drop row/lane padding
    return jnp.transpose(y, (0, 3, 1, 2))                    # back to NCHW


# ----------------------------------------------------------------------------
# Pure-JAX reference (correctness check; bf16-rounded operands like the kernel)
# ----------------------------------------------------------------------------
def _reference(x_nchw, conv_w, conv_b, bn_gamma, bn_beta, eps=1e-5):
    kh, kw = conv_w.shape[2], conv_w.shape[3]
    xq = x_nchw.astype(jnp.bfloat16).astype(jnp.float32)
    wq = conv_w.astype(jnp.bfloat16).astype(jnp.float32)
    y = lax.conv_general_dilated(
        xq, wq, window_strides=(1, 1),
        padding=[(kh // 2, kh // 2), (kw // 2, kw // 2)],
        dimension_numbers=("NCHW", "OIHW", "NCHW"),
        precision=lax.Precision.HIGHEST,
    ) + conv_b.reshape(1, -1, 1, 1)
    if bn_gamma is not None:
        mean = jnp.mean(y, axis=(0, 2, 3), keepdims=True)
        var = jnp.mean((y - mean) ** 2, axis=(0, 2, 3), keepdims=True)
        y = (y - mean) * lax.rsqrt(var + eps) * bn_gamma.reshape(1, -1, 1, 1) \
            + bn_beta.reshape(1, -1, 1, 1)
    return y


# ----------------------------------------------------------------------------
if __name__ == "__main__":
    # BasicConv2d(input_dim=4, output_dim=8, kernel_size=(3, 3), bn=True)
    N, Cin, H, W = 2, 4, 16, 16
    Cout, KH, KW = 8, 3, 3

    key = jax.random.PRNGKey(0)
    kx, kw_, kb, kg, kbt = jax.random.split(key, 5)

    x = jax.random.normal(kx, (N, Cin, H, W), dtype=jnp.float32)
    conv_w = jax.random.normal(kw_, (Cout, Cin, KH, KW), dtype=jnp.float32) * 0.1
    conv_b = jax.random.normal(kb, (Cout,), dtype=jnp.float32) * 0.1
    bn_gamma = 1.0 + 0.1 * jax.random.normal(kg, (Cout,), dtype=jnp.float32)
    bn_beta = 0.1 * jax.random.normal(kbt, (Cout,), dtype=jnp.float32)

    fwd = jax.jit(basic_conv2d)
    out = jax.block_until_ready(fwd(x, conv_w, conv_b, bn_gamma, bn_beta))

    ref = jax.block_until_ready(_reference(x, conv_w, conv_b, bn_gamma, bn_beta))
    np.testing.assert_allclose(np.asarray(out), np.asarray(ref), rtol=2e-4, atol=2e-4)

    print("KERNEL_OK")
</pallas_src>

<mosaic_0001>
module attributes {stable_mosaic.version = 11 : i64} {
  func.func @_conv_kernel(%arg0: i32, %arg1: i32, %arg2: memref<1x18x16x12xbf16, #tpu.memory_space<vmem>>, %arg3: memref<3x12x128xbf16, #tpu.memory_space<vmem>>, %arg4: memref<1x128xf32, #tpu.memory_space<vmem>>, %arg5: memref<1x16x16x128xf32, #tpu.memory_space<vmem>>, %arg6: memref<1x1x2x128xf32, #tpu.memory_space<vmem>>) attributes {dimension_semantics = [#tpu.dimension_semantics<parallel>, #tpu.dimension_semantics<parallel>], iteration_bounds = array<i64: 2, 1>, scalar_prefetch = 0 : i64, scratch_operands = 0 : i64, tpu.core_type = #tpu.core_type<tc>, window_params = [{transform_indices = @transform_0, window_bounds = array<i64: 1, 18, 16, 12>}, {pipeline_mode = #tpu.pipeline_mode<synchronous>, transform_indices = @transform_1, window_bounds = array<i64: 3, 12, 128>}, {pipeline_mode = #tpu.pipeline_mode<synchronous>, transform_indices = @transform_2, window_bounds = array<i64: 1, 128>}, {transform_indices = @transform_3, window_bounds = array<i64: 1, 16, 16, 128>}, {transform_indices = @transform_4, window_bounds = array<i64: 1, 1, 2, 128>}]} {
    %c16_i32 = arith.constant 16 : i32
    %0 = arith.muli %arg1, %c16_i32 : i32
    %c0 = arith.constant 0 : index
    %1 = arith.index_cast %0 : i32 to index
    %c0_0 = arith.constant 0 : index
    %c0_1 = arith.constant 0 : index
    %2 = vector.load %arg2[%c0, %1, %c0_0, %c0_1] : memref<1x18x16x12xbf16, #tpu.memory_space<vmem>>, vector<1x16x16x12xbf16>
    %3 = vector.shape_cast %2 : vector<1x16x16x12xbf16> to vector<16x16x12xbf16>
    %4 = vector.shape_cast %3 : vector<16x16x12xbf16> to vector<256x12xbf16>
    %c0_2 = arith.constant 0 : index
    %c0_3 = arith.constant 0 : index
    %c0_4 = arith.constant 0 : index
    %5 = vector.load %arg3[%c0_2, %c0_3, %c0_4] : memref<3x12x128xbf16, #tpu.memory_space<vmem>>, vector<1x12x128xbf16>
    %6 = vector.shape_cast %5 : vector<1x12x128xbf16> to vector<12x128xbf16>
    %cst = arith.constant dense<0.000000e+00> : vector<256x128xf32>
    %7 = tpu.matmul %4, %6, %cst {dimension_numbers = #tpu.dot_dimension_numbers<[1], [0], [0], [1], [0, 0, 1, 1], [], []>} : vector<256x12xbf16>, vector<12x128xbf16>, vector<256x128xf32> -> vector<256x128xf32>
    %c1_i32 = arith.constant 1 : i32
    %8 = arith.addi %0, %c1_i32 : i32
    %c0_5 = arith.constant 0 : index
    %9 = arith.index_cast %8 : i32 to index
    %c0_6 = arith.constant 0 : index
    %c0_7 = arith.constant 0 : index
    %10 = vector.load %arg2[%c0_5, %9, %c0_6, %c0_7] : memref<1x18x16x12xbf16, #tpu.memory_space<vmem>>, vector<1x16x16x12xbf16>
    %11 = vector.shape_cast %10 : vector<1x16x16x12xbf16> to vector<16x16x12xbf16>
    %12 = vector.shape_cast %11 : vector<16x16x12xbf16> to vector<256x12xbf16>
    %c1 = arith.constant 1 : index
    %c0_8 = arith.constant 0 : index
    %c0_9 = arith.constant 0 : index
    %13 = vector.load %arg3[%c1, %c0_8, %c0_9] : memref<3x12x128xbf16, #tpu.memory_space<vmem>>, vector<1x12x128xbf16>
    %14 = vector.shape_cast %13 : vector<1x12x128xbf16> to vector<12x128xbf16>
    %cst_10 = arith.constant dense<0.000000e+00> : vector<256x128xf32>
    %15 = tpu.matmul %12, %14, %cst_10 {dimension_numbers = #tpu.dot_dimension_numbers<[1], [0], [0], [1], [0, 0, 1, 1], [], []>} : vector<256x12xbf16>, vector<12x128xbf16>, vector<256x128xf32> -> vector<256x128xf32>
    %16 = arith.addf %7, %15 : vector<256x128xf32>
    %c2_i32 = arith.constant 2 : i32
    %17 = arith.addi %0, %c2_i32 : i32
    %c0_11 = arith.constant 0 : index
    %18 = arith.index_cast %17 : i32 to index
    %c0_12 = arith.constant 0 : index
    %c0_13 = arith.constant 0 : index
    %19 = vector.load %arg2[%c0_11, %18, %c0_12, %c0_13] : memref<1x18x16x12xbf16, #tpu.memory_space<vmem>>, vector<1x16x16x12xbf16>
    %20 = vector.shape_cast %19 : vector<1x16x16x12xbf16> to vector<16x16x12xbf16>
    %21 = vector.shape_cast %20 : vector<16x16x12xbf16> to vector<256x12xbf16>
    %c2 = arith.constant 2 : index
    %c0_14 = arith.constant 0 : index
    %c0_15 = arith.constant 0 : index
    %22 = vector.load %arg3[%c2, %c0_14, %c0_15] : memref<3x12x128xbf16, #tpu.memory_space<vmem>>, vector<1x12x128xbf16>
    %23 = vector.shape_cast %22 : vector<1x12x128xbf16> to vector<12x128xbf16>
    %cst_16 = arith.constant dense<0.000000e+00> : vector<256x128xf32>
    %24 = tpu.matmul %21, %23, %cst_16 {dimension_numbers = #tpu.dot_dimension_numbers<[1], [0], [0], [1], [0, 0, 1, 1], [], []>} : vector<256x12xbf16>, vector<12x128xbf16>, vector<256x128xf32> -> vector<256x128xf32>
    %25 = arith.addf %16, %24 : vector<256x128xf32>
    %c0_17 = arith.constant 0 : index
    %c0_18 = arith.constant 0 : index
    %26 = vector.load %arg4[%c0_17, %c0_18] : memref<1x128xf32, #tpu.memory_space<vmem>>, vector<1x128xf32>
    %27 = vector.broadcast %26 : vector<1x128xf32> to vector<256x128xf32>
    %28 = arith.addf %25, %27 : vector<256x128xf32>
    %29 = vector.shape_cast %28 : vector<256x128xf32> to vector<16x16x128xf32>
    %c0_19 = arith.constant 0 : index
    %c0_20 = arith.constant 0 : index
    %c0_21 = arith.constant 0 : index
    %c0_22 = arith.constant 0 : index
    %30 = vector.load %arg5[%c0_19, %c0_20, %c0_21, %c0_22] : memref<1x16x16x128xf32, #tpu.memory_space<vmem>>, vector<1x16x16x128xf32>
    %31 = vector.shape_cast %30 : vector<1x16x16x128xf32> to vector<16x16x128xf32>
    %32 = vector.shape_cast %29 : vector<16x16x128xf32> to vector<1x16x16x128xf32>
    tpu.vector_store %arg5[%c0_19, %c0_20, %c0_21, %c0_22], %32 {strides = array<i32>} : memref<1x16x16x128xf32, #tpu.memory_space<vmem>>, vector<1x16x16x128xf32>,
    %33 = tpu.iota {dimensions = array<i32: 0>} : vector<16x16x1xi32>
    %34 = vector.broadcast %0 : i32 to vector<16x16x1xi32>
    %35 = arith.addi %33, %34 : vector<16x16x1xi32>
    %c16_i32_23 = arith.constant 16 : i32
    %36 = vector.broadcast %c16_i32_23 : i32 to vector<16x16x1xi32>
    %37 = arith.cmpi slt, %35, %36 : vector<16x16x1xi32>
    %cst_24 = arith.constant 0.000000e+00 : f32
    %38 = vector.shape_cast %37 : vector<16x16x1xi1> to vector<16x16x1xi1>
    %39 = vector.broadcast %38 : vector<16x16x1xi1> to vector<16x16x128xi1>
    %40 = vector.broadcast %cst_24 : f32 to vector<16x16x128xf32>
    %41 = arith.select %39, %29, %40 : vector<16x16x128xi1>, vector<16x16x128xf32>
    %cst_25 = arith.constant dense<0.000000e+00> : vector<128xf32>
    %42 = vector.multi_reduction <add>, %41, %cst_25 [0, 1] : vector<16x16x128xf32> to vector<128xf32>
    %43 = vector.shape_cast %42 : vector<128xf32> to vector<1x128xf32>
    %44 = arith.mulf %41, %29 : vector<16x16x128xf32>
    %cst_26 = arith.constant dense<0.000000e+00> : vector<128xf32>
    %45 = vector.multi_reduction <add>, %44, %cst_26 [0, 1] : vector<16x16x128xf32> to vector<128xf32>
    %46 = vector.shape_cast %45 : vector<128xf32> to vector<1x128xf32>
    %c0_27 = arith.constant 0 : index
    %c0_28 = arith.constant 0 : index
    %c0_29 = arith.constant 0 : index
    %c0_30 = arith.constant 0 : index
    %47 = vector.load %arg6[%c0_27, %c0_28, %c0_29, %c0_30] : memref<1x1x2x128xf32, #tpu.memory_space<vmem>>, vector<1x1x1x128xf32>
    %48 = vector.shape_cast %47 : vector<1x1x1x128xf32> to vector<1x128xf32>
    %49 = vector.shape_cast %43 : vector<1x128xf32> to vector<1x1x1x128xf32>
    tpu.vector_store %arg6[%c0_27, %c0_28, %c0_29, %c0_30], %49 {strides = array<i32>} : memref<1x1x2x128xf32, #tpu.memory_space<vmem>>, vector<1x1x1x128xf32>,
    %c0_31 = arith.constant 0 : index
    %c0_32 = arith.constant 0 : index
    %c1_33 = arith.constant 1 : index
    %c0_34 = arith.constant 0 : index
    %50 = vector.load %arg6[%c0_31, %c0_32, %c1_33, %c0_34] : memref<1x1x2x128xf32, #tpu.memory_space<vmem>>, vector<1x1x1x128xf32>
    %51 = vector.shape_cast %50 : vector<1x1x1x128xf32> to vector<1x128xf32>
    %52 = vector.shape_cast %46 : vector<1x128xf32> to vector<1x1x1x128xf32>
    tpu.vector_store %arg6[%c0_31, %c0_32, %c1_33, %c0_34], %52 {strides = array<i32>} : memref<1x1x2x128xf32, #tpu.memory_space<vmem>>, vector<1x1x1x128xf32>,
    return
  }
  func.func @transform_0(%arg0: i32, %arg1: i32) -> (i32, i32, i32, i32) {
    %c0_i32 = arith.constant 0 : i32
    %c0_i32_0 = arith.constant 0 : i32
    %c0_i32_1 = arith.constant 0 : i32
    %c0_i32_2 = arith.constant 0 : i32
    return %arg0, %c0_i32, %c0_i32_0, %c0_i32_1 : i32, i32, i32, i32
  }
  func.func @transform_1(%arg0: i32, %arg1: i32) -> (i32, i32, i32) {
    %c0_i32 = arith.constant 0 : i32
    %c0_i32_0 = arith.constant 0 : i32
    %c0_i32_1 = arith.constant 0 : i32
    %c0_i32_2 = arith.constant 0 : i32
    return %c0_i32, %c0_i32_0, %c0_i32_1 : i32, i32, i32
  }
  func.func @transform_2(%arg0: i32, %arg1: i32) -> (i32, i32) {
    %c0_i32 = arith.constant 0 : i32
    %c0_i32_0 = arith.constant 0 : i32
    %c0_i32_1 = arith.constant 0 : i32
    return %c0_i32, %c0_i32_0 : i32, i32
  }
  func.func @transform_3(%arg0: i32, %arg1: i32) -> (i32, i32, i32, i32) {
    %c0_i32 = arith.constant 0 : i32
    %c0_i32_0 = arith.constant 0 : i32
    %c0_i32_1 = arith.constant 0 : i32
    return %arg0, %arg1, %c0_i32, %c0_i32_0 : i32, i32, i32, i32
  }
  func.func @transform_4(%arg0: i32, %arg1: i32) -> (i32, i32, i32, i32) {
    %c0_i32 = arith.constant 0 : i32
    %c0_i32_0 = arith.constant 0 : i32
    %c0_i32_1 = arith.constant 0 : i32
    return %arg0, %arg1, %c0_i32, %c0_i32_0 : i32, i32, i32, i32
  }
}

module attributes {stable_mosaic.version = 11 : i64} {
  func.func @_bn_norm_kernel(%arg0: i32, %arg1: i32, %arg2: memref<1x16x16x128xf32, #tpu.memory_space<vmem>>, %arg3: memref<1x128xf32, #tpu.memory_space<vmem>>, %arg4: memref<1x128xf32, #tpu.memory_space<vmem>>, %arg5: memref<1x16x16x128xf32, #tpu.memory_space<vmem>>) attributes {dimension_semantics = [#tpu.dimension_semantics<parallel>, #tpu.dimension_semantics<parallel>], iteration_bounds = array<i64: 2, 1>, scalar_prefetch = 0 : i64, scratch_operands = 0 : i64, tpu.core_type = #tpu.core_type<tc>, window_params = [{transform_indices = @transform_0, window_bounds = array<i64: 1, 16, 16, 128>}, {pipeline_mode = #tpu.pipeline_mode<synchronous>, transform_indices = @transform_1, window_bounds = array<i64: 1, 128>}, {pipeline_mode = #tpu.pipeline_mode<synchronous>, transform_indices = @transform_2, window_bounds = array<i64: 1, 128>}, {transform_indices = @transform_3, window_bounds = array<i64: 1, 16, 16, 128>}]} {
    %c0 = arith.constant 0 : index
    %c0_0 = arith.constant 0 : index
    %c0_1 = arith.constant 0 : index
    %c0_2 = arith.constant 0 : index
    %0 = vector.load %arg2[%c0, %c0_0, %c0_1, %c0_2] : memref<1x16x16x128xf32, #tpu.memory_space<vmem>>, vector<1x16x16x128xf32>
    %c0_3 = arith.constant 0 : index
    %c0_4 = arith.constant 0 : index
    %1 = vector.load %arg3[%c0_3, %c0_4] : memref<1x128xf32, #tpu.memory_space<vmem>>, vector<1x128xf32>
    %2 = vector.shape_cast %1 : vector<1x128xf32> to vector<128xf32>
    %3 = vector.shape_cast %2 : vector<128xf32> to vector<1x1x1x128xf32>
    %4 = vector.broadcast %3 : vector<1x1x1x128xf32> to vector<1x16x16x128xf32>
    %5 = arith.mulf %0, %4 : vector<1x16x16x128xf32>
    %c0_5 = arith.constant 0 : index
    %c0_6 = arith.constant 0 : index
    %6 = vector.load %arg4[%c0_5, %c0_6] : memref<1x128xf32, #tpu.memory_space<vmem>>, vector<1x128xf32>
    %7 = vector.shape_cast %6 : vector<1x128xf32> to vector<128xf32>
    %8 = vector.shape_cast %7 : vector<128xf32> to vector<1x1x1x128xf32>
    %9 = vector.broadcast %8 : vector<1x1x1x128xf32> to vector<1x16x16x128xf32>
    %10 = arith.addf %5, %9 : vector<1x16x16x128xf32>
    %c0_7 = arith.constant 0 : index
    %c0_8 = arith.constant 0 : index
    %c0_9 = arith.constant 0 : index
    %c0_10 = arith.constant 0 : index
    %11 = vector.load %arg5[%c0_7, %c0_8, %c0_9, %c0_10] : memref<1x16x16x128xf32, #tpu.memory_space<vmem>>, vector<1x16x16x128xf32>
    tpu.vector_store %arg5[%c0_7, %c0_8, %c0_9, %c0_10], %10 {strides = array<i32>} : memref<1x16x16x128xf32, #tpu.memory_space<vmem>>, vector<1x16x16x128xf32>,
    return
  }
  func.func @transform_0(%arg0: i32, %arg1: i32) -> (i32, i32, i32, i32) {
    %c0_i32 = arith.constant 0 : i32
    %c0_i32_0 = arith.constant 0 : i32
    %c0_i32_1 = arith.constant 0 : i32
    return %arg0, %arg1, %c0_i32, %c0_i32_0 : i32, i32, i32, i32
  }
  func.func @transform_1(%arg0: i32, %arg1: i32) -> (i32, i32) {
    %c0_i32 = arith.constant 0 : i32
    %c0_i32_0 = arith.constant 0 : i32
    %c0_i32_1 = arith.constant 0 : i32
    return %c0_i32, %c0_i32_0 : i32, i32
  }
  func.func @transform_2(%arg0: i32, %arg1: i32) -> (i32, i32) {
    %c0_i32 = arith.constant 0 : i32
    %c0_i32_0 = arith.constant 0 : i32
    %c0_i32_1 = arith.constant 0 : i32
    return %c0_i32, %c0_i32_0 : i32, i32
  }
  func.func @transform_3(%arg0: i32, %arg1: i32) -> (i32, i32, i32, i32) {
    %c0_i32 = arith.constant 0 : i32
    %c0_i32_0 = arith.constant 0 : i32
    %c0_i32_1 = arith.constant 0 : i32
    return %arg0, %arg1, %c0_i32, %c0_i32_0 : i32, i32, i32, i32
  }
}

</mosaic_0001>

<llo_original>
// kernel: basic_conv2d.3
$region0: #{basic_conv2d.3}
  #allocation0 [shape = 'u32[]', space=smem, size = 0x4, offset = 0x4, fixed_abs, tag = 'smem constant byte address 0x4 - core index']
  #allocation1 [shape = 'u32[144,128]{1,0:T(1,128)}', space=vmem, size = 0x12000, scoped, tag = 'internal scratch']
  %s0 = inlined_call_operand.vmem [shape: f32[2,16,16,128], index: 0, kind: input, shape index: {}, may-alias: {0,3}]
  %s1 = inlined_call_operand.vmem [shape: f32[1,128], index: 1, kind: input, shape index: {}]
  %s2 = inlined_call_operand.vmem [shape: f32[1,128], index: 2, kind: input, shape index: {}]
  %s3 = inlined_call_operand.vmem [shape: f32[2,16,16,128], index: 3, kind: output, shape index: {}, may-alias: {0,3}]
  %s4 = sld [smem:[#allocation0]]
  $region45: #{basic_conv2d.3} parent=0
    _
  %s6 = ssub.s32 1, %s4
  %s7 = scalar_select 0, %s6, %s4
  loop: start=0, step=1, limit=4
  $region2: #{basic_conv2d.3} parent=0 // loop_pre_header
    _
  $region3: #{basic_conv2d.3} parent=0 // loop_header
    %s9 = sphi 0, %s13
    %p10 = scmp.ge.s32.totalorder %s9, 4
    %s16 = sphi 0, %s28
    %s17 = sphi 0, %s24
    %s18 = sphi 0, %s16
    %s19 = sphi 0, %s17
    %s20 = sphi 0, %s18
    %s21 = sphi 0, %s19
    %s33 = sphi 0, %s35
    %s36 = sphi 0, %s33
    %s37 = sphi 0, %s36
    %s53 = sphi 0, %s37
    %s57 = sphi 0, %s57
    %s59 = sphi 0, %s57
    %s60 = sphi 0, %s59
    %s74 = sphi 0, %s60
    %s78 = sphi 0, %s78
    %s80 = sphi 0, %s78
    %s81 = sphi 0, %s80
    %s95 = sphi 0, %s81
    %s103 = sphi 0, %s105
    %s106 = sphi 0, %s103
    %s107 = sphi 0, %s106
    %s123 = sphi 0, %s107
  $region4: #{basic_conv2d.3} parent=0 // loop_header_branch
    %12 = sbr.rel (%p10) target = $region8
  $region5: #{basic_conv2d.3} parent=0 // loop_body
    %s14 = ssub.s32 %s9, 1
    %s15 = ssub.s32 %s9, 2
    %s22 = sadd.s32 1, %s17
    %p23 = scmp.ge.s32.totalorder %s22, 1
    %s24 = scalar_select %p23, 0, %s22
    %s25 = sadd.s32 1, %s16
    %s26 = scalar_select %p23, %s25, %s16
    %p27 = scmp.ge.s32.totalorder %s26, 2
    %s28 = scalar_select %p27, 0, %s26
    %s29 = ssub.s32 %s16, %s28
    %s30 = ssub.s32 %s17, %s24
    %s31 = sor.u32 %s29, %s30
    %p32 = scmp.eq.s32.totalorder %s31, 0
    %s34 = sadd.s32 %s33, 1
    %s35 = scalar_select %p32, %s33, %s34
    %p38 = pneg %p32
    %p39 = scmp.eq.s32.totalorder %s9, 1
    %p40 = por %p38, %p39
    %p41 = scmp.ne.s32.totalorder %s33, %s36
    %p42 = scmp.eq.s32.totalorder %s9, 0
    %p43 = por %p41, %p42
    %p44 = scmp.ne.s32.totalorder %s33, %s36
    %p45 = scmp.eq.s32.totalorder %s14, 1
    %p46 = por %p44, %p45
    %p47 = scmp.ne.s32.totalorder %s36, %s37
    %p48 = scmp.eq.s32.totalorder %s14, 0
    %p49 = por %p47, %p48
    %p50 = scmp.ne.s32.totalorder %s36, %s37
    %p51 = scmp.eq.s32.totalorder %s15, 1
    %p52 = por %p50, %p51
    %p54 = scmp.ne.s32.totalorder %s37, %s53
    %p55 = scmp.eq.s32.totalorder %s15, 0
    %p56 = por %p54, %p55
    %s58 = sadd.s32 %s57, 1
    %p61 = scmp.eq.s32.totalorder %s9, 1
    %p62 = scmp.ne.s32.totalorder %s57, %s59
    %p63 = scmp.eq.s32.totalorder %s9, 0
    %p64 = por %p62, %p63
    %p65 = scmp.ne.s32.totalorder %s57, %s59
    %p66 = scmp.eq.s32.totalorder %s14, 1
    %p67 = por %p65, %p66
    %p68 = scmp.ne.s32.totalorder %s59, %s60
    %p69 = scmp.eq.s32.totalorder %s14, 0
    %p70 = por %p68, %p69
    %p71 = scmp.ne.s32.totalorder %s59, %s60
    %p72 = scmp.eq.s32.totalorder %s15, 1
    %p73 = por %p71, %p72
    %p75 = scmp.ne.s32.totalorder %s60, %s74
    %p76 = scmp.eq.s32.totalorder %s15, 0
    %p77 = por %p75, %p76
    %s79 = sadd.s32 %s78, 1
    %p82 = scmp.eq.s32.totalorder %s9, 1
    %p83 = scmp.ne.s32.totalorder %s78, %s80
    %p84 = scmp.eq.s32.totalorder %s9, 0
    %p85 = por %p83, %p84
    %p86 = scmp.ne.s32.totalorder %s78, %s80
    %p87 = scmp.eq.s32.totalorder %s14, 1
    %p88 = por %p86, %p87
    %p89 = scmp.ne.s32.totalorder %s80, %s81
    %p90 = scmp.eq.s32.totalorder %s14, 0
    %p91 = por %p89, %p90
    %p92 = scmp.ne.s32.totalorder %s80, %s81
    %p93 = scmp.eq.s32.totalorder %s15, 1
    %p94 = por %p92, %p93
    %p96 = scmp.ne.s32.totalorder %s81, %s95
    %p97 = scmp.eq.s32.totalorder %s15, 0
    %p98 = por %p96, %p97
    %s99 = ssub.s32 %s16, %s28
    %s100 = ssub.s32 %s17, %s24
    %s101 = sor.u32 %s99, %s100
    %p102 = scmp.eq.s32.totalorder %s101, 0
    %s104 = sadd.s32 %s103, 1
    %s105 = scalar_select %p102, %s103, %s104
    %p108 = pneg %p102
    %p109 = scmp.eq.s32.totalorder %s9, 1
    %p110 = por %p108, %p109
    %p111 = scmp.ne.s32.totalorder %s103, %s106
    %p112 = scmp.eq.s32.totalorder %s9, 0
    %p113 = por %p111, %p112
    %p114 = scmp.ne.s32.totalorder %s103, %s106
    %p115 = scmp.eq.s32.totalorder %s14, 1
    %p116 = por %p114, %p115
    %p117 = scmp.ne.s32.totalorder %s106, %s107
    %p118 = scmp.eq.s32.totalorder %s14, 0
    %p119 = por %p117, %p118
    %p120 = scmp.ne.s32.totalorder %s106, %s107
    %p121 = scmp.eq.s32.totalorder %s15, 1
    %p122 = por %p120, %p121
    %p124 = scmp.ne.s32.totalorder %s107, %s123
    %p125 = scmp.eq.s32.totalorder %s15, 0
    %p126 = por %p124, %p125
    %p127 = scmp.le.s32.totalorder 1, %s9
    %p128 = scmp.lt.s32.totalorder %s9, 3
    %p129 = pnand %p127, %p128
    %p130 = pneg %p129
    // Predicated region
    $region9: #{basic_conv2d.3} parent=5 // pred_check
      _
    $region10: #{basic_conv2d.3} parent=5 // pred_check_branch
      %132 = sbr.rel (%p129) target = $region12
    $region11: #{basic_conv2d.3} parent=5 // pred_region
      %s133 = ssub.s32 %s9, 1
      // Predicated region
      $region13: #{basic_conv2d.3} parent=11 // pred_check
        %p134 = pneg %p70
      $region14: #{basic_conv2d.3} parent=11 // pred_check_branch
        %136 = sbr.rel (%p134) target = $region16
      $region15: #{basic_conv2d.3} parent=11 // pred_region
        _
      $region16: #{basic_conv2d.3} parent=11 // pred_fallthru
        _
      // Predicated region
      $region17: #{basic_conv2d.3} parent=11 // pred_check
        %p137 = pneg %p91
      $region18: #{basic_conv2d.3} parent=11 // pred_check_branch
        %139 = sbr.rel (%p137) target = $region20
      $region19: #{basic_conv2d.3} parent=11 // pred_region
        _
      $region20: #{basic_conv2d.3} parent=11 // pred_fallthru
        _
    $region12: #{basic_conv2d.3} parent=5 // pred_fallthru
      _
    %p140 = scmp.lt.s32.totalorder %s9, 2
    // Predicated region
    $region21: #{basic_conv2d.3} parent=5 // pred_check
      %p141 = pneg %p140
    $region22: #{basic_conv2d.3} parent=5 // pred_check_branch
      %143 = sbr.rel (%p141) target = $region24
    $region23: #{basic_conv2d.3} parent=5 // pred_region
      // Predicated region
      $region25: #{basic_conv2d.3} parent=23 // pred_check
        %p144 = pneg %p43
      $region26: #{basic_conv2d.3} parent=23 // pred_check_branch
        %146 = sbr.rel (%p144) target = $region28
      $region27: #{basic_conv2d.3} parent=23 // pred_region
        %s147 = smul.u32 16, %s17
        %p148 = scmp.lt.s32.totalorder %s16, 1
        %s149 = scalar_select %p148, %s16, 1
        %p150 = scmp.lt.s32.totalorder %s147, 15
        %s151 = scalar_select %p150, %s147, 15
        %s152 = smul.addr %s151, 2
        %s153 = smul.addr %s149, 32
        %s154 = sadd.s32 %s152, %s153
        %s155 = smul.addr %s154, 8
        %s156 = scalar_lea.vmem %s0, %s155
        %s157 = smul.u32 16, %s17
      $region28: #{basic_conv2d.3} parent=23 // pred_fallthru
        _
    $region24: #{basic_conv2d.3} parent=5 // pred_fallthru
      _
    %p158 = scmp.le.s32.totalorder 1, %s9
    %p159 = scmp.lt.s32.totalorder %s9, 3
    %p160 = pnand %p158, %p159
    %p161 = pneg %p160
    // Predicated region
    $region29: #{basic_conv2d.3} parent=5 // pred_check
      _
    $region30: #{basic_conv2d.3} parent=5 // pred_check_branch
      %163 = sbr.rel (%p160) target = $region32
    $region31: #{basic_conv2d.3} parent=5 // pred_region
      %s164 = ssub.s32 %s9, 1
      %s165 = smul.u32 16, %s19
      %p166 = scmp.lt.s32.totalorder %s18, 1
      %s167 = scalar_select %p166, %s18, 1
      %p168 = scmp.lt.s32.totalorder %s165, 15
      %s169 = scalar_select %p168, %s165, 15
      %s170 = smul.addr %s169, 2
      %s171 = smul.addr %s167, 32
      %s172 = sadd.s32 %s170, %s171
      %s173 = smul.addr %s172, 8
      %s174 = scalar_lea.vmem %s0, %s173
      %p175 = pneg %p49
      %p176 = pneg %p46
      %p177 = pneg %p70
      %p178 = pneg %p67
      %p179 = pneg %p91
      %p180 = pneg %p88
      %p181 = pneg %p119
      %p182 = pneg %p116
      %s183 = smul.u32 16, %s19
      %p184 = scmp.lt.s32.totalorder %s18, 1
      %s185 = scalar_select %p184, %s18, 1
      %p186 = scmp.lt.s32.totalorder %s183, 15
      %s187 = scalar_select %p186, %s183, 15
      %s188 = smul.addr %s187, 2
      %s189 = smul.addr %s185, 32
      %s190 = sadd.s32 %s188, %s189
      %s191 = smul.addr %s190, 8
      %s192 = scalar_lea.vmem %s3, %s191
      %s193 = smul.u32 16, %s19
      %p194 = scmp.lt.s32.totalorder %s18, 1
      %s195 = scalar_select %p194, %s18, 1
      %p196 = scmp.lt.s32.totalorder %s193, 15
      %s197 = scalar_select %p196, %s193, 15
      %s198 = smul.addr %s197, 2
      %s199 = smul.addr %s195, 32
      %s200 = sadd.s32 %s198, %s199
      %s201 = smul.addr %s200, 8
      %s202 = scalar_lea.vmem %s0, %s201
      %s203 = smul.u32 16, %s19
      %s204 = smul.u32 16, %s19
      %p205 = scmp.lt.s32.totalorder %s18, 1
      %s206 = scalar_select %p205, %s18, 1
      %p207 = scmp.lt.s32.totalorder %s204, 15
      %s208 = scalar_select %p207, %s204, 15
      %s209 = smul.addr %s208, 2
      %s210 = smul.addr %s206, 32
      %s211 = sadd.s32 %s209, %s210
      %s212 = smul.addr %s211, 8
      %s213 = scalar_lea.vmem %s3, %s212
      %s214 = smul.u32 16, %s19
      %v215 = vld [vmem:[%s202] sm:$0xff]
      %v216 = vld [vmem:[%s202 + $0x8] sm:$0xff]
      %v217 = vld [vmem:[%s202 + $0x10] sm:$0xff]
      %v218 = vld [vmem:[%s202 + $0x18] sm:$0xff]
      %v219 = vld [vmem:[%s202 + $0x20] sm:$0xff]
      %v220 = vld [vmem:[%s202 + $0x28] sm:$0xff]
      %v221 = vld [vmem:[%s202 + $0x30] sm:$0xff]
      %v222 = vld [vmem:[%s202 + $0x38] sm:$0xff]
      %v223 = vld [vmem:[%s202 + $0x40] sm:$0xff]
      %v224 = vld [vmem:[%s202 + $0x48] sm:$0xff]
      %v225 = vld [vmem:[%s202 + $0x50] sm:$0xff]
      %v226 = vld [vmem:[%s202 + $0x58] sm:$0xff]
      %v227 = vld [vmem:[%s202 + $0x60] sm:$0xff]
      %v228 = vld [vmem:[%s202 + $0x68] sm:$0xff]
      %v229 = vld [vmem:[%s202 + $0x70] sm:$0xff]
      %v230 = vld [vmem:[%s202 + $0x78] sm:$0xff]
      %v231 = vld [vmem:[%s202 + $0x80] sm:$0xff]
      %v232 = vld [vmem:[%s202 + $0x88] sm:$0xff]
      %v233 = vld [vmem:[%s202 + $0x90] sm:$0xff]
      %v234 = vld [vmem:[%s202 + $0x98] sm:$0xff]
      %v235 = vld [vmem:[%s202 + $0xa0] sm:$0xff]
      %v236 = vld [vmem:[%s202 + $0xa8] sm:$0xff]
      %v237 = vld [vmem:[%s202 + $0xb0] sm:$0xff]
      %v238 = vld [vmem:[%s202 + $0xb8] sm:$0xff]
      %v239 = vld [vmem:[%s202 + $0xc0] sm:$0xff]
      %v240 = vld [vmem:[%s202 + $0xc8] sm:$0xff]
      %v241 = vld [vmem:[%s202 + $0xd0] sm:$0xff]
      %v242 = vld [vmem:[%s202 + $0xd8] sm:$0xff]
      %v243 = vld [vmem:[%s202 + $0xe0] sm:$0xff]
      %v244 = vld [vmem:[%s202 + $0xe8] sm:$0xff]
      %v245 = vld [vmem:[%s202 + $0xf0] sm:$0xff]
      %v246 = vld [vmem:[%s202 + $0xf8] sm:$0xff]
      %v247 = vld [vmem:[%s1] sm:$0x1]
      %v249 = vlaneseq
      %v250 = vshrl.u32 %v249, 7
      %v251 = vsub.s32 0, %v250
      %v252 = vrot.slane %v247, %v251
      %v254 = vmul.f32 %v215, %v252
      %v255 = vmul.f32 %v216, %v252
      %v256 = vmul.f32 %v217, %v252
      %v257 = vmul.f32 %v218, %v252
      %v258 = vmul.f32 %v219, %v252
      %v259 = vmul.f32 %v220, %v252
      %v260 = vmul.f32 %v221, %v252
      %v261 = vmul.f32 %v222, %v252
      %v262 = vmul.f32 %v223, %v252
      %v263 = vmul.f32 %v224, %v252
      %v264 = vmul.f32 %v225, %v252
      %v265 = vmul.f32 %v226, %v252
      %v266 = vmul.f32 %v227, %v252
      %v267 = vmul.f32 %v228, %v252
      %v268 = vmul.f32 %v229, %v252
      %v269 = vmul.f32 %v230, %v252
      %v270 = vmul.f32 %v231, %v252
      %v271 = vmul.f32 %v232, %v252
      %v272 = vmul.f32 %v233, %v252
      %v273 = vmul.f32 %v234, %v252
      %v274 = vmul.f32 %v235, %v252
      %v275 = vmul.f32 %v236, %v252
      %v276 = vmul.f32 %v237, %v252
      %v277 = vmul.f32 %v238, %v252
      %v278 = vmul.f32 %v239, %v252
      %v279 = vmul.f32 %v240, %v252
      %v280 = vmul.f32 %v241, %v252
      %v281 = vmul.f32 %v242, %v252
      %v282 = vmul.f32 %v243, %v252
      %v283 = vmul.f32 %v244, %v252
      %v284 = vmul.f32 %v245, %v252
      %v285 = vmul.f32 %v246, %v252
      %v286 = vld [vmem:[%s2] sm:$0x1]
      %v288 = vlaneseq
      %v289 = vshrl.u32 %v288, 7
      %v290 = vsub.s32 0, %v289
      %v291 = vrot.slane %v286, %v290
      %v293 = vadd.f32 %v254, %v291
      %v294 = vadd.f32 %v255, %v291
      %v295 = vadd.f32 %v256, %v291
      %v296 = vadd.f32 %v257, %v291
      %v297 = vadd.f32 %v258, %v291
      %v298 = vadd.f32 %v259, %v291
      %v299 = vadd.f32 %v260, %v291
      %v300 = vadd.f32 %v261, %v291
      %v301 = vadd.f32 %v262, %v291
      %v302 = vadd.f32 %v263, %v291
      %v303 = vadd.f32 %v264, %v291
      %v304 = vadd.f32 %v265, %v291
      %v305 = vadd.f32 %v266, %v291
      %v306 = vadd.f32 %v267, %v291
      %v307 = vadd.f32 %v268, %v291
      %v308 = vadd.f32 %v269, %v291
      %v309 = vadd.f32 %v270, %v291
      %v310 = vadd.f32 %v271, %v291
      %v311 = vadd.f32 %v272, %v291
      %v312 = vadd.f32 %v273, %v291
      %v313 = vadd.f32 %v274, %v291
      %v314 = vadd.f32 %v275, %v291
      %v315 = vadd.f32 %v276, %v291
      %v316 = vadd.f32 %v277, %v291
      %v317 = vadd.f32 %v278, %v291
      %v318 = vadd.f32 %v279, %v291
      %v319 = vadd.f32 %v280, %v291
      %v320 = vadd.f32 %v281, %v291
      %v321 = vadd.f32 %v282, %v291
      %v322 = vadd.f32 %v283, %v291
      %v323 = vadd.f32 %v284, %v291
      %v324 = vadd.f32 %v285, %v291
      %325 = vst [vmem:[%s213] sm:$0xff] %v293
      %326 = vst [vmem:[%s213 + $0x8] sm:$0xff] %v294
      %327 = vst [vmem:[%s213 + $0x10] sm:$0xff] %v295
      %328 = vst [vmem:[%s213 + $0x18] sm:$0xff] %v296
      %329 = vst [vmem:[%s213 + $0x20] sm:$0xff] %v297
      %330 = vst [vmem:[%s213 + $0x28] sm:$0xff] %v298
      %331 = vst [vmem:[%s213 + $0x30] sm:$0xff] %v299
      %332 = vst [vmem:[%s213 + $0x38] sm:$0xff] %v300
      %333 = vst [vmem:[%s213 + $0x40] sm:$0xff] %v301
      %334 = vst [vmem:[%s213 + $0x48] sm:$0xff] %v302
      %335 = vst [vmem:[%s213 + $0x50] sm:$0xff] %v303
      %336 = vst [vmem:[%s213 + $0x58] sm:$0xff] %v304
      %337 = vst [vmem:[%s213 + $0x60] sm:$0xff] %v305
      %338 = vst [vmem:[%s213 + $0x68] sm:$0xff] %v306
      %339 = vst [vmem:[%s213 + $0x70] sm:$0xff] %v307
      %340 = vst [vmem:[%s213 + $0x78] sm:$0xff] %v308
      %341 = vst [vmem:[%s213 + $0x80] sm:$0xff] %v309
      %342 = vst [vmem:[%s213 + $0x88] sm:$0xff] %v310
      %343 = vst [vmem:[%s213 + $0x90] sm:$0xff] %v311
      %344 = vst [vmem:[%s213 + $0x98] sm:$0xff] %v312
      %345 = vst [vmem:[%s213 + $0xa0] sm:$0xff] %v313
      %346 = vst [vmem:[%s213 + $0xa8] sm:$0xff] %v314
      %347 = vst [vmem:[%s213 + $0xb0] sm:$0xff] %v315
      %348 = vst [vmem:[%s213 + $0xb8] sm:$0xff] %v316
      %349 = vst [vmem:[%s213 + $0xc0] sm:$0xff] %v317
      %350 = vst [vmem:[%s213 + $0xc8] sm:$0xff] %v318
      %351 = vst [vmem:[%s213 + $0xd0] sm:$0xff] %v319
      %352 = vst [vmem:[%s213 + $0xd8] sm:$0xff] %v320
      %353 = vst [vmem:[%s213 + $0xe0] sm:$0xff] %v321
      %354 = vst [vmem:[%s213 + $0xe8] sm:$0xff] %v322
      %355 = vst [vmem:[%s213 + $0xf0] sm:$0xff] %v323
      %356 = vst [vmem:[%s213 + $0xf8] sm:$0xff] %v324
      %s357 = smul.u32 16, %s19
      %p358 = scmp.lt.s32.totalorder %s18, 1
      %s359 = scalar_select %p358, %s18, 1
      %p360 = scmp.lt.s32.totalorder %s357, 15
      %s361 = scalar_select %p360, %s357, 15
      %s362 = smul.addr %s361, 2
      %s363 = smul.addr %s359, 32
      %s364 = sadd.s32 %s362, %s363
      %s365 = smul.addr %s364, 8
      %s366 = scalar_lea.vmem %s3, %s365
      // Predicated region
      $region33: #{basic_conv2d.3} parent=31 // pred_check
        %p367 = pneg %p116
      $region34: #{basic_conv2d.3} parent=31 // pred_check_branch
        %369 = sbr.rel (%p367) target = $region36
      $region35: #{basic_conv2d.3} parent=31 // pred_region
        %s370 = smul.u32 16, %s19
      $region36: #{basic_conv2d.3} parent=31 // pred_fallthru
        _
    $region32: #{basic_conv2d.3} parent=5 // pred_fallthru
      _
    %p371 = scmp.le.s32.totalorder 2, %s9
    // Predicated region
    $region37: #{basic_conv2d.3} parent=5 // pred_check
      %p372 = pneg %p371
    $region38: #{basic_conv2d.3} parent=5 // pred_check_branch
      %374 = sbr.rel (%p372) target = $region40
    $region39: #{basic_conv2d.3} parent=5 // pred_region
      %s375 = ssub.s32 %s9, 2
      // Predicated region
      $region41: #{basic_conv2d.3} parent=39 // pred_check
        %p376 = pneg %p122
      $region42: #{basic_conv2d.3} parent=39 // pred_check_branch
        %378 = sbr.rel (%p376) target = $region44
      $region43: #{basic_conv2d.3} parent=39 // pred_region
        %s379 = smul.u32 16, %s21
        %p380 = scmp.lt.s32.totalorder %s20, 1
        %s381 = scalar_select %p380, %s20, 1
        %p382 = scmp.lt.s32.totalorder %s379, 15
        %s383 = scalar_select %p382, %s379, 15
        %s384 = smul.addr %s383, 2
        %s385 = smul.addr %s381, 32
        %s386 = sadd.s32 %s384, %s385
        %s387 = smul.addr %s386, 8
        %s388 = scalar_lea.vmem %s3, %s387
      $region44: #{basic_conv2d.3} parent=39 // pred_fallthru
        _
    $region40: #{basic_conv2d.3} parent=5 // pred_fallthru
      _
  $region6: #{basic_conv2d.3} parent=0 // loop_footer
    %s13 = sadd.s32 1, %s9
  $region7: #{basic_conv2d.3} parent=0 // loop_footer_branch
    %8 = sbr.rel target = $region3
  $region8: #{basic_conv2d.3} parent=0 // loop_exit
    _

// kernel: basic_conv2d.2
$region0: #{basic_conv2d.2}
  #allocation0 [shape = 'u32[]', space=smem, size = 0x4, offset = 0x4, fixed_abs, tag = 'smem constant byte address 0x4 - core index']
  #allocation1 [shape = 'u32[144,128]{1,0:T(1,128)}', space=vmem, size = 0x12000, scoped, tag = 'internal scratch']
  %s0 = inlined_call_operand.vmem [shape: bf16[2,18,16,12], index: 0, kind: input, shape index: {}]
  %s1 = inlined_call_operand.vmem [shape: bf16[3,12,128], index: 1, kind: input, shape index: {}]
  %s2 = inlined_call_operand.vmem [shape: f32[1,128], index: 2, kind: input, shape index: {}]
  %s3 = inlined_call_operand.vmem [shape: f32[2,16,16,128], index: 3, kind: output, shape index: {0}]
  %s4 = inlined_call_operand.vmem [shape: f32[2,1,2,128], index: 4, kind: output, shape index: {1}]
  %5 = xla_tuple %s3, %s4
  %s6 = sld [smem:[#allocation0]]
  $region53: #{basic_conv2d.2} parent=0
    _
  %s8 = ssub.s32 1, %s6
  %s9 = scalar_select 0, %s8, %s6
  loop: start=0, step=1, limit=4
  $region2: #{basic_conv2d.2} parent=0 // loop_pre_header
    _
  $region3: #{basic_conv2d.2} parent=0 // loop_header
    %s11 = sphi 0, %s15
    %p12 = scmp.ge.s32.totalorder %s11, 4
    %s18 = sphi 0, %s30
    %s19 = sphi 0, %s26
    %s20 = sphi 0, %s18
    %s21 = sphi 0, %s19
    %s22 = sphi 0, %s20
    %s23 = sphi 0, %s21
    %s33 = sphi 0, %s35
    %s36 = sphi 0, %s33
    %s37 = sphi 0, %s36
    %s53 = sphi 0, %s37
    %s57 = sphi 0, %s57
    %s59 = sphi 0, %s57
    %s60 = sphi 0, %s59
    %s74 = sphi 0, %s60
    %s78 = sphi 0, %s78
    %s80 = sphi 0, %s78
    %s81 = sphi 0, %s80
    %s95 = sphi 0, %s81
    %s103 = sphi 0, %s105
    %s106 = sphi 0, %s103
    %s107 = sphi 0, %s106
    %s123 = sphi 0, %s107
    %s131 = sphi 0, %s133
    %s134 = sphi 0, %s131
    %s135 = sphi 0, %s134
    %s151 = sphi 0, %s135
  $region4: #{basic_conv2d.2} parent=0 // loop_header_branch
    %14 = sbr.rel (%p12) target = $region8
  $region5: #{basic_conv2d.2} parent=0 // loop_body
    %s16 = ssub.s32 %s11, 1
    %s17 = ssub.s32 %s11, 2
    %s24 = sadd.s32 1, %s19
    %p25 = scmp.ge.s32.totalorder %s24, 1
    %s26 = scalar_select %p25, 0, %s24
    %s27 = sadd.s32 1, %s18
    %s28 = scalar_select %p25, %s27, %s18
    %p29 = scmp.ge.s32.totalorder %s28, 2
    %s30 = scalar_select %p29, 0, %s28
    %s31 = ssub.s32 %s18, %s30
    %p32 = scmp.eq.s32.totalorder %s31, 0
    %s34 = sadd.s32 %s33, 1
    %s35 = scalar_select %p32, %s33, %s34
    %p38 = pneg %p32
    %p39 = scmp.eq.s32.totalorder %s11, 1
    %p40 = por %p38, %p39
    %p41 = scmp.ne.s32.totalorder %s33, %s36
    %p42 = scmp.eq.s32.totalorder %s11, 0
    %p43 = por %p41, %p42
    %p44 = scmp.ne.s32.totalorder %s33, %s36
    %p45 = scmp.eq.s32.totalorder %s16, 1
    %p46 = por %p44, %p45
    %p47 = scmp.ne.s32.totalorder %s36, %s37
    %p48 = scmp.eq.s32.totalorder %s16, 0
    %p49 = por %p47, %p48
    %p50 = scmp.ne.s32.totalorder %s36, %s37
    %p51 = scmp.eq.s32.totalorder %s17, 1
    %p52 = por %p50, %p51
    %p54 = scmp.ne.s32.totalorder %s37, %s53
    %p55 = scmp.eq.s32.totalorder %s17, 0
    %p56 = por %p54, %p55
    %s58 = sadd.s32 %s57, 1
    %p61 = scmp.eq.s32.totalorder %s11, 1
    %p62 = scmp.ne.s32.totalorder %s57, %s59
    %p63 = scmp.eq.s32.totalorder %s11, 0
    %p64 = por %p62, %p63
    %p65 = scmp.ne.s32.totalorder %s57, %s59
    %p66 = scmp.eq.s32.totalorder %s16, 1
    %p67 = por %p65, %p66
    %p68 = scmp.ne.s32.totalorder %s59, %s60
    %p69 = scmp.eq.s32.totalorder %s16, 0
    %p70 = por %p68, %p69
    %p71 = scmp.ne.s32.totalorder %s59, %s60
    %p72 = scmp.eq.s32.totalorder %s17, 1
    %p73 = por %p71, %p72
    %p75 = scmp.ne.s32.totalorder %s60, %s74
    %p76 = scmp.eq.s32.totalorder %s17, 0
    %p77 = por %p75, %p76
    %s79 = sadd.s32 %s78, 1
    %p82 = scmp.eq.s32.totalorder %s11, 1
    %p83 = scmp.ne.s32.totalorder %s78, %s80
    %p84 = scmp.eq.s32.totalorder %s11, 0
    %p85 = por %p83, %p84
    %p86 = scmp.ne.s32.totalorder %s78, %s80
    %p87 = scmp.eq.s32.totalorder %s16, 1
    %p88 = por %p86, %p87
    %p89 = scmp.ne.s32.totalorder %s80, %s81
    %p90 = scmp.eq.s32.totalorder %s16, 0
    %p91 = por %p89, %p90
    %p92 = scmp.ne.s32.totalorder %s80, %s81
    %p93 = scmp.eq.s32.totalorder %s17, 1
    %p94 = por %p92, %p93
    %p96 = scmp.ne.s32.totalorder %s81, %s95
    %p97 = scmp.eq.s32.totalorder %s17, 0
    %p98 = por %p96, %p97
    %s99 = ssub.s32 %s18, %s30
    %s100 = ssub.s32 %s19, %s26
    %s101 = sor.u32 %s99, %s100
    %p102 = scmp.eq.s32.totalorder %s101, 0
    %s104 = sadd.s32 %s103, 1
    %s105 = scalar_select %p102, %s103, %s104
    %p108 = pneg %p102
    %p109 = scmp.eq.s32.totalorder %s11, 1
    %p110 = por %p108, %p109
    %p111 = scmp.ne.s32.totalorder %s103, %s106
    %p112 = scmp.eq.s32.totalorder %s11, 0
    %p113 = por %p111, %p112
    %p114 = scmp.ne.s32.totalorder %s103, %s106
    %p115 = scmp.eq.s32.totalorder %s16, 1
    %p116 = por %p114, %p115
    %p117 = scmp.ne.s32.totalorder %s106, %s107
    %p118 = scmp.eq.s32.totalorder %s16, 0
    %p119 = por %p117, %p118
    %p120 = scmp.ne.s32.totalorder %s106, %s107
    %p121 = scmp.eq.s32.totalorder %s17, 1
    %p122 = por %p120, %p121
    %p124 = scmp.ne.s32.totalorder %s107, %s123
    %p125 = scmp.eq.s32.totalorder %s17, 0
    %p126 = por %p124, %p125
    %s127 = ssub.s32 %s18, %s30
    %s128 = ssub.s32 %s19, %s26
    %s129 = sor.u32 %s127, %s128
    %p130 = scmp.eq.s32.totalorder %s129, 0
    %s132 = sadd.s32 %s131, 1
    %s133 = scalar_select %p130, %s131, %s132
    %p136 = pneg %p130
    %p137 = scmp.eq.s32.totalorder %s11, 1
    %p138 = por %p136, %p137
    %p139 = scmp.ne.s32.totalorder %s131, %s134
    %p140 = scmp.eq.s32.totalorder %s11, 0
    %p141 = por %p139, %p140
    %p142 = scmp.ne.s32.totalorder %s131, %s134
    %p143 = scmp.eq.s32.totalorder %s16, 1
    %p144 = por %p142, %p143
    %p145 = scmp.ne.s32.totalorder %s134, %s135
    %p146 = scmp.eq.s32.totalorder %s16, 0
    %p147 = por %p145, %p146
    %p148 = scmp.ne.s32.totalorder %s134, %s135
    %p149 = scmp.eq.s32.totalorder %s17, 1
    %p150 = por %p148, %p149
    %p152 = scmp.ne.s32.totalorder %s135, %s151
    %p153 = scmp.eq.s32.totalorder %s17, 0
    %p154 = por %p152, %p153
    %p155 = scmp.le.s32.totalorder 1, %s11
    %p156 = scmp.lt.s32.totalorder %s11, 3
    %p157 = pnand %p155, %p156
    %p158 = pneg %p157
    // Predicated region
    $region9: #{basic_conv2d.2} parent=5 // pred_check
      _
    $region10: #{basic_conv2d.2} parent=5 // pred_check_branch
      %160 = sbr.rel (%p157) target = $region12
    $region11: #{basic_conv2d.2} parent=5 // pred_region
      %s161 = ssub.s32 %s11, 1
      // Predicated region
      $region13: #{basic_conv2d.2} parent=11 // pred_check
        %p162 = pneg %p70
      $region14: #{basic_conv2d.2} parent=11 // pred_check_branch
        %164 = sbr.rel (%p162) target = $region16
      $region15: #{basic_conv2d.2} parent=11 // pred_region
        _
      $region16: #{basic_conv2d.2} parent=11 // pred_fallthru
        _
      // Predicated region
      $region17: #{basic_conv2d.2} parent=11 // pred_check
        %p165 = pneg %p91
      $region18: #{basic_conv2d.2} parent=11 // pred_check_branch
        %167 = sbr.rel (%p165) target = $region20
      $region19: #{basic_conv2d.2} parent=11 // pred_region
        _
      $region20: #{basic_conv2d.2} parent=11 // pred_fallthru
        _
    $region12: #{basic_conv2d.2} parent=5 // pred_fallthru
      _
    %p168 = scmp.lt.s32.totalorder %s11, 2
    // Predicated region
    $region21: #{basic_conv2d.2} parent=5 // pred_check
      %p169 = pneg %p168
    $region22: #{basic_conv2d.2} parent=5 // pred_check_branch
      %171 = sbr.rel (%p169) target = $region24
    $region23: #{basic_conv2d.2} parent=5 // pred_region
      // Predicated region
      $region25: #{basic_conv2d.2} parent=23 // pred_check
        %p172 = pneg %p43
      $region26: #{basic_conv2d.2} parent=23 // pred_check_branch
        %174 = sbr.rel (%p172) target = $region28
      $region27: #{basic_conv2d.2} parent=23 // pred_region
        %p175 = scmp.lt.s32.totalorder %s18, 1
        %s176 = scalar_select %p175, %s18, 1
        %s177 = smul.addr %s176, 36
        %s178 = smul.addr %s177, 4
        %s179 = scalar_lea.vmem %s0, %s178
      $region28: #{basic_conv2d.2} parent=23 // pred_fallthru
        _
    $region24: #{basic_conv2d.2} parent=5 // pred_fallthru
      _
    %p180 = scmp.le.s32.totalorder 1, %s11
    %p181 = scmp.lt.s32.totalorder %s11, 3
    %p182 = pnand %p180, %p181
    %p183 = pneg %p182
    // Predicated region
    $region29: #{basic_conv2d.2} parent=5 // pred_check
      _
    $region30: #{basic_conv2d.2} parent=5 // pred_check_branch
      %185 = sbr.rel (%p182) target = $region32
    $region31: #{basic_conv2d.2} parent=5 // pred_region
      %s186 = ssub.s32 %s11, 1
      %p187 = scmp.lt.s32.totalorder %s20, 1
      %s188 = scalar_select %p187, %s20, 1
      %s189 = smul.addr %s188, 36
      %s190 = smul.addr %s189, 4
      %s191 = scalar_lea.vmem %s0, %s190
      %p192 = pneg %p49
      %p193 = pneg %p46
      %p194 = pneg %p70
      %p195 = pneg %p67
      %p196 = pneg %p91
      %p197 = pneg %p88
      %p198 = pneg %p119
      %p199 = pneg %p116
      %s200 = smul.u32 16, %s21
      %p201 = scmp.lt.s32.totalorder %s20, 1
      %s202 = scalar_select %p201, %s20, 1
      %p203 = scmp.lt.s32.totalorder %s200, 15
      %s204 = scalar_select %p203, %s200, 15
      %s205 = smul.addr %s204, 2
      %s206 = smul.addr %s202, 32
      %s207 = sadd.s32 %s205, %s206
      %s208 = smul.addr %s207, 8
      %s209 = scalar_lea.vmem %s3, %s208
      %p210 = pneg %p147
      %p211 = pneg %p144
      %p212 = scmp.lt.s32.totalorder %s20, 1
      %s213 = scalar_select %p212, %s20, 1
      %p214 = scmp.lt.s32.totalorder %s21, 0
      %s215 = scalar_select %p214, %s21, 0
      %s216 = sadd.s32 %s215, %s213
      %s217 = smul.addr %s216, 2
      %s218 = scalar_lea.vmem %s4, %s217
      %p219 = scmp.lt.s32.totalorder %s20, 1
      %s220 = scalar_select %p219, %s20, 1
      %s221 = smul.addr %s220, 36
      %s222 = smul.addr %s221, 4
      %s223 = scalar_lea.vmem %s0, %s222
      %s224 = smul.u32 16, %s21
      %p225 = scmp.lt.s32.totalorder %s20, 1
      %s226 = scalar_select %p225, %s20, 1
      %p227 = scmp.lt.s32.totalorder %s224, 15
      %s228 = scalar_select %p227, %s224, 15
      %s229 = smul.addr %s228, 2
      %s230 = smul.addr %s226, 32
      %s231 = sadd.s32 %s229, %s230
      %s232 = smul.addr %s231, 8
      %s233 = scalar_lea.vmem %s3, %s232
      %s234 = smul.u32 16, %s21
      %p235 = scmp.lt.s32.totalorder %s20, 1
      %s236 = scalar_select %p235, %s20, 1
      %p237 = scmp.lt.s32.totalorder %s21, 0
      %s238 = scalar_select %p237, %s21, 0
      %s239 = sadd.s32 %s238, %s236
      %s240 = smul.addr %s239, 2
      %s241 = scalar_lea.vmem %s4, %s240
      %s243 = smul.u32 %s21, 16
      %s244 = smul.u32 %s243, 2
      %s245 = smul.addr %s244, 4
      %s246 = scalar_lea.vmem %s223, %s245
      %v247 = vld [vmem:[%s246] sm:$0xf]
      %v248 = vld [vmem:[%s246 + $0x4] sm:$0xf]
      %v249 = vld [vmem:[%s246 + $0x8] sm:$0xf]
      %v250 = vld [vmem:[%s246 + $0xc] sm:$0xf]
      %v251 = vld [vmem:[%s246 + $0x10] sm:$0xf]
      %v252 = vld [vmem:[%s246 + $0x14] sm:$0xf]
      %v253 = vld [vmem:[%s246 + $0x18] sm:$0xf]
      %v254 = vld [vmem:[%s246 + $0x1c] sm:$0xf]
      %v255 = vld [vmem:[%s246 + $0x20] sm:$0xf]
      %v256 = vld [vmem:[%s246 + $0x24] sm:$0xf]
      %v257 = vld [vmem:[%s246 + $0x28] sm:$0xf]
      %v258 = vld [vmem:[%s246 + $0x2c] sm:$0xf]
      %v259 = vld [vmem:[%s246 + $0x30] sm:$0xf]
      %v260 = vld [vmem:[%s246 + $0x34] sm:$0xf]
      %v261 = vld [vmem:[%s246 + $0x38] sm:$0xf]
      %v262 = vld [vmem:[%s246 + $0x3c] sm:$0xf]
      %v263 = vld [vmem:[%s246 + $0x40] sm:$0xf]
      %v264 = vld [vmem:[%s246 + $0x44] sm:$0xf]
      %v265 = vld [vmem:[%s246 + $0x48] sm:$0xf]
      %v266 = vld [vmem:[%s246 + $0x4c] sm:$0xf]
      %v267 = vld [vmem:[%s246 + $0x50] sm:$0xf]
      %v268 = vld [vmem:[%s246 + $0x54] sm:$0xf]
      %v269 = vld [vmem:[%s246 + $0x58] sm:$0xf]
      %v270 = vld [vmem:[%s246 + $0x5c] sm:$0xf]
      %v271 = vld [vmem:[%s246 + $0x60] sm:$0xf]
      %v272 = vld [vmem:[%s246 + $0x64] sm:$0xf]
      %v273 = vld [vmem:[%s246 + $0x68] sm:$0xf]
      %v274 = vld [vmem:[%s246 + $0x6c] sm:$0xf]
      %v275 = vld [vmem:[%s246 + $0x70] sm:$0xf]
      %v276 = vld [vmem:[%s246 + $0x74] sm:$0xf]
      %v277 = vld [vmem:[%s246 + $0x78] sm:$0xf]
      %v278 = vld [vmem:[%s246 + $0x7c] sm:$0xf]
      %v279 = vld [vmem:[%s1] sm:$0xf]
      %v280 = vld [vmem:[%s1 + $0x4] sm:$0x3]
      %s281 = sadd.s32 %s243, 1
      %s282 = smul.u32 %s281, 2
      %s283 = smul.addr %s282, 4
      %s284 = scalar_lea.vmem %s223, %s283
      %v285 = vld [vmem:[%s284] sm:$0xf]
      %v286 = vld [vmem:[%s284 + $0x4] sm:$0xf]
      %v287 = vld [vmem:[%s284 + $0x8] sm:$0xf]
      %v288 = vld [vmem:[%s284 + $0xc] sm:$0xf]
      %v289 = vld [vmem:[%s284 + $0x10] sm:$0xf]
      %v290 = vld [vmem:[%s284 + $0x14] sm:$0xf]
      %v291 = vld [vmem:[%s284 + $0x18] sm:$0xf]
      %v292 = vld [vmem:[%s284 + $0x1c] sm:$0xf]
      %v293 = vld [vmem:[%s284 + $0x20] sm:$0xf]
      %v294 = vld [vmem:[%s284 + $0x24] sm:$0xf]
      %v295 = vld [vmem:[%s284 + $0x28] sm:$0xf]
      %v296 = vld [vmem:[%s284 + $0x2c] sm:$0xf]
      %v297 = vld [vmem:[%s284 + $0x30] sm:$0xf]
      %v298 = vld [vmem:[%s284 + $0x34] sm:$0xf]
      %v299 = vld [vmem:[%s284 + $0x38] sm:$0xf]
      %v300 = vld [vmem:[%s284 + $0x3c] sm:$0xf]
      %v301 = vld [vmem:[%s284 + $0x40] sm:$0xf]
      %v302 = vld [vmem:[%s284 + $0x44] sm:$0xf]
      %v303 = vld [vmem:[%s284 + $0x48] sm:$0xf]
      %v304 = vld [vmem:[%s284 + $0x4c] sm:$0xf]
      %v305 = vld [vmem:[%s284 + $0x50] sm:$0xf]
      %v306 = vld [vmem:[%s284 + $0x54] sm:$0xf]
      %v307 = vld [vmem:[%s284 + $0x58] sm:$0xf]
      %v308 = vld [vmem:[%s284 + $0x5c] sm:$0xf]
      %v309 = vld [vmem:[%s284 + $0x60] sm:$0xf]
      %v310 = vld [vmem:[%s284 + $0x64] sm:$0xf]
      %v311 = vld [vmem:[%s284 + $0x68] sm:$0xf]
      %v312 = vld [vmem:[%s284 + $0x6c] sm:$0xf]
      %v313 = vld [vmem:[%s284 + $0x70] sm:$0xf]
      %v314 = vld [vmem:[%s284 + $0x74] sm:$0xf]
      %v315 = vld [vmem:[%s284 + $0x78] sm:$0xf]
      %v316 = vld [vmem:[%s284 + $0x7c] sm:$0xf]
      %s317 = scalar_lea.vmem %s1, 8
      %v318 = vld [vmem:[%s317] sm:$0xf]
      %v319 = vld [vmem:[%s317 + $0x4] sm:$0x3]
      %v352 = vunpack.c.l.b16 %v285
      %v353 = vunpack.c.l.b16 %v286
      %v354 = vunpack.c.l.b16 %v287
      %v355 = vunpack.c.l.b16 %v288
      %v356 = vunpack.c.l.b16 %v289
      %v357 = vunpack.c.l.b16 %v290
      %v358 = vunpack.c.l.b16 %v291
      %v359 = vunpack.c.l.b16 %v292
      %v360 = vunpack.c.l.b16 %v293
      %v361 = vunpack.c.l.b16 %v294
      %v362 = vunpack.c.l.b16 %v295
      %v363 = vunpack.c.l.b16 %v296
      %v364 = vunpack.c.l.b16 %v297
      %v365 = vunpack.c.l.b16 %v298
      %v366 = vunpack.c.l.b16 %v299
      %v367 = vunpack.c.l.b16 %v300
      %v368 = vunpack.c.l.b16 %v301
      %v369 = vunpack.c.l.b16 %v302
      %v370 = vunpack.c.l.b16 %v303
      %v371 = vunpack.c.l.b16 %v304
      %v372 = vunpack.c.l.b16 %v305
      %v373 = vunpack.c.l.b16 %v306
      %v374 = vunpack.c.l.b16 %v307
      %v375 = vunpack.c.l.b16 %v308
      %v376 = vunpack.c.l.b16 %v309
      %v377 = vunpack.c.l.b16 %v310
      %v378 = vunpack.c.l.b16 %v311
      %v379 = vunpack.c.l.b16 %v312
      %v380 = vunpack.c.l.b16 %v313
      %v381 = vunpack.c.l.b16 %v314
      %v382 = vunpack.c.l.b16 %v315
      %v383 = vunpack.c.l.b16 %v316
      %v384 = vpack.c.b16 %v353, %v352
      %v385 = vpack.c.b16 %v355, %v354
      %v386 = vpack.c.b16 %v357, %v356
      %v387 = vpack.c.b16 %v359, %v358
      %v388 = vpack.c.b16 %v361, %v360
      %v389 = vpack.c.b16 %v363, %v362
      %v390 = vpack.c.b16 %v365, %v364
      %v391 = vpack.c.b16 %v367, %v366
      %v392 = vpack.c.b16 %v369, %v368
      %v393 = vpack.c.b16 %v371, %v370
      %v394 = vpack.c.b16 %v373, %v372
      %v395 = vpack.c.b16 %v375, %v374
      %v396 = vpack.c.b16 %v377, %v376
      %v397 = vpack.c.b16 %v379, %v378
      %v398 = vpack.c.b16 %v381, %v380
      %v399 = vpack.c.b16 %v383, %v382
      %v402 = vunpack.c.l.b16 %v318
      %v403 = vunpack.c.l.b16 %v319
      %v404 = vpack.c.b16 %v403, %v402
      %vm405 = vcmask 97280
      %v407 = vsel %vm405, %v384, 0
      %v410 = vsel %vm405, %v385, 0
      %v413 = vsel %vm405, %v386, 0
      %v416 = vsel %vm405, %v387, 0
      %v419 = vsel %vm405, %v388, 0
      %v422 = vsel %vm405, %v389, 0
      %v425 = vsel %vm405, %v390, 0
      %v428 = vsel %vm405, %v391, 0
      %v431 = vsel %vm405, %v392, 0
      %v434 = vsel %vm405, %v393, 0
      %v437 = vsel %vm405, %v394, 0
      %v440 = vsel %vm405, %v395, 0
      %v443 = vsel %vm405, %v396, 0
      %v446 = vsel %vm405, %v397, 0
      %v449 = vsel %vm405, %v398, 0
      %v452 = vsel %vm405, %v399, 0
      %vm454 = vcmask 1045504
      %v456 = vsel %vm454, %v404, 0
      %458 = vmatprep.subr.bf16.mxu0 0
      %459 = vmatpush1.bf16.msra.mxu0 %v456
      %460 = vmatprep.subr.bf16.mxu0 0
      %461 = vmatpush1.bf16.msra.mxu0 0
      %462 = vmatprep.subr.bf16.mxu0 0
      %463 = vmatpush1.bf16.msra.mxu0 0
      %464 = vmatprep.subr.bf16.mxu0 0
      %465 = vmatpush1.bf16.msra.mxu0 0
      %466 = vmatprep.subr.bf16.mxu0 0
      %467 = vmatpush1.bf16.msra.mxu0 0
      %468 = vmatprep.subr.bf16.mxu0 0
      %469 = vmatpush1.bf16.msra.mxu0 0
      %470 = vmatprep.subr.bf16.mxu0 0
      %471 = vmatpush1.bf16.msra.mxu0 0
      %472 = vmatprep.subr.bf16.mxu0 0
      %473 = vmatpush1.bf16.msra.mxu0 0
      %474 = vmatprep.subr.bf16.mxu0 0
      %475 = vmatpush1.bf16.msra.mxu0 0
      %476 = vmatprep.subr.bf16.mxu0 0
      %477 = vmatpush1.bf16.msra.mxu0 0
      %478 = vmatprep.subr.bf16.mxu0 0
      %479 = vmatpush1.bf16.msra.mxu0 0
      %480 = vmatprep.subr.bf16.mxu0 0
      %481 = vmatpush1.bf16.msra.mxu0 0
      %482 = vmatprep.subr.bf16.mxu0 0
      %483 = vmatpush1.bf16.msra.mxu0 0
      %484 = vmatprep.subr.bf16.mxu0 0
      %485 = vmatpush1.bf16.msra.mxu0 0
      %486 = vmatprep.subr.bf16.mxu0 0
      %487 = vmatpush1.bf16.msra.mxu0 0
      %488 = vmatprep.subr.bf16.mxu0 0
      %489 = vmatpush1.bf16.msra.mxu0 0
      %490 = vmatprep.mubr.bf16.mxu0 0
      %491 = vmatmul.mubr.bf16.gmra.mrb[0].mxu0 %v407
      %v492 = vpop.f32.mrb[0].mxu0
      %v493 = vadd.f32 0.0, %v492
      %v494 = vpop.f32.mrb[0].mxu0
      %v495 = vpop.f32.mrb[0].mxu0
      %v496 = vadd.f32 0.0, %v495
      %v497 = vpop.f32.mrb[0].mxu0
      %498 = vmatprep.mubr.bf16.mxu0 0
      %499 = vmatmul.mubr.bf16.gmra.mrb[0].mxu0 %v410
      %v500 = vpop.f32.mrb[0].mxu0
      %v501 = vadd.f32 0.0, %v500
      %v502 = vpop.f32.mrb[0].mxu0
      %v503 = vpop.f32.mrb[0].mxu0
      %v504 = vadd.f32 0.0, %v503
      %v505 = vpop.f32.mrb[0].mxu0
      %506 = vmatprep.mubr.bf16.mxu0 0
      %507 = vmatmul.mubr.bf16.gmra.mrb[0].mxu0 %v413
      %v508 = vpop.f32.mrb[0].mxu0
      %v509 = vadd.f32 0.0, %v508
      %v510 = vpop.f32.mrb[0].mxu0
      %v511 = vpop.f32.mrb[0].mxu0
      %v512 = vadd.f32 0.0, %v511
      %v513 = vpop.f32.mrb[0].mxu0
      %514 = vmatprep.mubr.bf16.mxu0 0
      %515 = vmatmul.mubr.bf16.gmra.mrb[0].mxu0 %v416
      %v516 = vpop.f32.mrb[0].mxu0
      %v517 = vadd.f32 0.0, %v516
      %v518 = vpop.f32.mrb[0].mxu0
      %v519 = vpop.f32.mrb[0].mxu0
      %v520 = vadd.f32 0.0, %v519
      %v521 = vpop.f32.mrb[0].mxu0
      %522 = vmatprep.mubr.bf16.mxu0 0
      %523 = vmatmul.mubr.bf16.gmra.mrb[0].mxu0 %v419
      %v524 = vpop.f32.mrb[0].mxu0
      %v525 = vadd.f32 0.0, %v524
      %v526 = vpop.f32.mrb[0].mxu0
      %v527 = vpop.f32.mrb[0].mxu0
      %v528 = vadd.f32 0.0, %v527
      %v529 = vpop.f32.mrb[0].mxu0
      %530 = vmatprep.mubr.bf16.mxu0 0
      %531 = vmatmul.mubr.bf16.gmra.mrb[0].mxu0 %v422
      %v532 = vpop.f32.mrb[0].mxu0
      %v533 = vadd.f32 0.0, %v532
      %v534 = vpop.f32.mrb[0].mxu0
      %v535 = vpop.f32.mrb[0].mxu0
      %v536 = vadd.f32 0.0, %v535
      %v537 = vpop.f32.mrb[0].mxu0
      %538 = vmatprep.mubr.bf16.mxu0 0
      %539 = vmatmul.mubr.bf16.gmra.mrb[0].mxu0 %v425
      %v540 = vpop.f32.mrb[0].mxu0
      %v541 = vadd.f32 0.0, %v540
      %v542 = vpop.f32.mrb[0].mxu0
      %v543 = vpop.f32.mrb[0].mxu0
      %v544 = vadd.f32 0.0, %v543
      %v545 = vpop.f32.mrb[0].mxu0
      %546 = vmatprep.mubr.bf16.mxu0 0
      %547 = vmatmul.mubr.bf16.gmra.mrb[0].mxu0 %v428
      %v548 = vpop.f32.mrb[0].mxu0
      %v549 = vadd.f32 0.0, %v548
      %v550 = vpop.f32.mrb[0].mxu0
      %v551 = vpop.f32.mrb[0].mxu0
      %v552 = vadd.f32 0.0, %v551
      %v553 = vpop.f32.mrb[0].mxu0
      %554 = vmatprep.mubr.bf16.mxu0 0
      %555 = vmatmul.mubr.bf16.gmra.mrb[0].mxu0 %v431
      %v556 = vpop.f32.mrb[0].mxu0
      %v557 = vadd.f32 0.0, %v556
      %v558 = vpop.f32.mrb[0].mxu0
      %v559 = vpop.f32.mrb[0].mxu0
      %v560 = vadd.f32 0.0, %v559
      %v561 = vpop.f32.mrb[0].mxu0
      %562 = vmatprep.mubr.bf16.mxu0 0
      %563 = vmatmul.mubr.bf16.gmra.mrb[0].mxu0 %v434
      %v564 = vpop.f32.mrb[0].mxu0
      %v565 = vadd.f32 0.0, %v564
      %v566 = vpop.f32.mrb[0].mxu0
      %v567 = vpop.f32.mrb[0].mxu0
      %v568 = vadd.f32 0.0, %v567
      %v569 = vpop.f32.mrb[0].mxu0
      %570 = vmatprep.mubr.bf16.mxu0 0
      %571 = vmatmul.mubr.bf16.gmra.mrb[0].mxu0 %v437
      %v572 = vpop.f32.mrb[0].mxu0
      %v573 = vadd.f32 0.0, %v572
      %v574 = vpop.f32.mrb[0].mxu0
      %v575 = vpop.f32.mrb[0].mxu0
      %v576 = vadd.f32 0.0, %v575
      %v577 = vpop.f32.mrb[0].mxu0
      %578 = vmatprep.mubr.bf16.mxu0 0
      %579 = vmatmul.mubr.bf16.gmra.mrb[0].mxu0 %v440
      %v580 = vpop.f32.mrb[0].mxu0
      %v581 = vadd.f32 0.0, %v580
      %v582 = vpop.f32.mrb[0].mxu0
      %v583 = vpop.f32.mrb[0].mxu0
      %v584 = vadd.f32 0.0, %v583
      %v585 = vpop.f32.mrb[0].mxu0
      %586 = vmatprep.mubr.bf16.mxu0 0
      %587 = vmatmul.mubr.bf16.gmra.mrb[0].mxu0 %v443
      %v588 = vpop.f32.mrb[0].mxu0
      %v589 = vadd.f32 0.0, %v588
      %v590 = vpop.f32.mrb[0].mxu0
      %v591 = vpop.f32.mrb[0].mxu0
      %v592 = vadd.f32 0.0, %v591
      %v593 = vpop.f32.mrb[0].mxu0
      %594 = vmatprep.mubr.bf16.mxu0 0
      %595 = vmatmul.mubr.bf16.gmra.mrb[0].mxu0 %v446
      %v596 = vpop.f32.mrb[0].mxu0
      %v597 = vadd.f32 0.0, %v596
      %v598 = vpop.f32.mrb[0].mxu0
      %v599 = vpop.f32.mrb[0].mxu0
      %v600 = vadd.f32 0.0, %v599
      %v601 = vpop.f32.mrb[0].mxu0
      %602 = vmatprep.mubr.bf16.mxu0 0
      %603 = vmatmul.mubr.bf16.gmra.mrb[0].mxu0 %v449
      %v604 = vpop.f32.mrb[0].mxu0
      %v605 = vadd.f32 0.0, %v604
      %v606 = vpop.f32.mrb[0].mxu0
      %v607 = vpop.f32.mrb[0].mxu0
      %v608 = vadd.f32 0.0, %v607
      %v609 = vpop.f32.mrb[0].mxu0
      %610 = vmatprep.mubr.bf16.mxu0 0
      %611 = vmatmul.mubr.bf16.gmra.mrb[0].mxu0 %v452
      %v612 = vpop.f32.mrb[0].mxu0
      %v613 = vadd.f32 0.0, %v612
      %v614 = vpop.f32.mrb[0].mxu0
      %v615 = vpop.f32.mrb[0].mxu0
      %v616 = vadd.f32 0.0, %v615
      %v617 = vpop.f32.mrb[0].mxu0
      %618 = vdwg.mxu0
      %v651 = vunpack.c.l.b16 %v247
      %v652 = vunpack.c.l.b16 %v248
      %v653 = vunpack.c.l.b16 %v249
      %v654 = vunpack.c.l.b16 %v250
      %v655 = vunpack.c.l.b16 %v251
      %v656 = vunpack.c.l.b16 %v252
      %v657 = vunpack.c.l.b16 %v253
      %v658 = vunpack.c.l.b16 %v254
      %v659 = vunpack.c.l.b16 %v255
      %v660 = vunpack.c.l.b16 %v256
      %v661 = vunpack.c.l.b16 %v257
      %v662 = vunpack.c.l.b16 %v258
      %v663 = vunpack.c.l.b16 %v259
      %v664 = vunpack.c.l.b16 %v260
      %v665 = vunpack.c.l.b16 %v261
      %v666 = vunpack.c.l.b16 %v262
      %v667 = vunpack.c.l.b16 %v263
      %v668 = vunpack.c.l.b16 %v264
      %v669 = vunpack.c.l.b16 %v265
      %v670 = vunpack.c.l.b16 %v266
      %v671 = vunpack.c.l.b16 %v267
      %v672 = vunpack.c.l.b16 %v268
      %v673 = vunpack.c.l.b16 %v269
      %v674 = vunpack.c.l.b16 %v270
      %v675 = vunpack.c.l.b16 %v271
      %v676 = vunpack.c.l.b16 %v272
      %v677 = vunpack.c.l.b16 %v273
      %v678 = vunpack.c.l.b16 %v274
      %v679 = vunpack.c.l.b16 %v275
      %v680 = vunpack.c.l.b16 %v276
      %v681 = vunpack.c.l.b16 %v277
      %v682 = vunpack.c.l.b16 %v278
      %v683 = vpack.c.b16 %v652, %v651
      %v684 = vpack.c.b16 %v654, %v653
      %v685 = vpack.c.b16 %v656, %v655
      %v686 = vpack.c.b16 %v658, %v657
      %v687 = vpack.c.b16 %v660, %v659
      %v688 = vpack.c.b16 %v662, %v661
      %v689 = vpack.c.b16 %v664, %v663
      %v690 = vpack.c.b16 %v666, %v665
      %v691 = vpack.c.b16 %v668, %v667
      %v692 = vpack.c.b16 %v670, %v669
      %v693 = vpack.c.b16 %v672, %v671
      %v694 = vpack.c.b16 %v674, %v673
      %v695 = vpack.c.b16 %v676, %v675
      %v696 = vpack.c.b16 %v678, %v677
      %v697 = vpack.c.b16 %v680, %v679
      %v698 = vpack.c.b16 %v682, %v681
      %v701 = vunpack.c.l.b16 %v279
      %v702 = vunpack.c.l.b16 %v280
      %v703 = vpack.c.b16 %v702, %v701
      %v705 = vsel %vm405, %v683, 0
      %v708 = vsel %vm405, %v684, 0
      %v711 = vsel %vm405, %v685, 0
      %v714 = vsel %vm405, %v686, 0
      %v717 = vsel %vm405, %v687, 0
      %v720 = vsel %vm405, %v688, 0
      %v723 = vsel %vm405, %v689, 0
      %v726 = vsel %vm405, %v690, 0
      %v729 = vsel %vm405, %v691, 0
      %v732 = vsel %vm405, %v692, 0
      %v735 = vsel %vm405, %v693, 0
      %v738 = vsel %vm405, %v694, 0
      %v741 = vsel %vm405, %v695, 0
      %v744 = vsel %vm405, %v696, 0
      %v747 = vsel %vm405, %v697, 0
      %v750 = vsel %vm405, %v698, 0
      %v753 = vsel %vm454, %v703, 0
      %755 = vmatprep.subr.bf16.mxu0 0
      %756 = vmatpush1.bf16.msra.mxu0 %v753
      %757 = vmatprep.subr.bf16.mxu0 0
      %758 = vmatpush1.bf16.msra.mxu0 0
      %759 = vmatprep.subr.bf16.mxu0 0
      %760 = vmatpush1.bf16.msra.mxu0 0
      %761 = vmatprep.subr.bf16.mxu0 0
      %762 = vmatpush1.bf16.msra.mxu0 0
      %763 = vmatprep.subr.bf16.mxu0 0
      %764 = vmatpush1.bf16.msra.mxu0 0
      %765 = vmatprep.subr.bf16.mxu0 0
      %766 = vmatpush1.bf16.msra.mxu0 0
      %767 = vmatprep.subr.bf16.mxu0 0
      %768 = vmatpush1.bf16.msra.mxu0 0
      %769 = vmatprep.subr.bf16.mxu0 0
      %770 = vmatpush1.bf16.msra.mxu0 0
      %771 = vmatprep.subr.bf16.mxu0 0
      %772 = vmatpush1.bf16.msra.mxu0 0
      %773 = vmatprep.subr.bf16.mxu0 0
      %774 = vmatpush1.bf16.msra.mxu0 0
      %775 = vmatprep.subr.bf16.mxu0 0
      %776 = vmatpush1.bf16.msra.mxu0 0
      %777 = vmatprep.subr.bf16.mxu0 0
      %778 = vmatpush1.bf16.msra.mxu0 0
      %779 = vmatprep.subr.bf16.mxu0 0
      %780 = vmatpush1.bf16.msra.mxu0 0
      %781 = vmatprep.subr.bf16.mxu0 0
      %782 = vmatpush1.bf16.msra.mxu0 0
      %783 = vmatprep.subr.bf16.mxu0 0
      %784 = vmatpush1.bf16.msra.mxu0 0
      %785 = vmatprep.subr.bf16.mxu0 0
      %786 = vmatpush1.bf16.msra.mxu0 0
      %787 = vmatprep.mubr.bf16.mxu0 0
      %788 = vmatmul.mubr.bf16.gmra.mrb[0].mxu0 %v705
      %v789 = vpop.f32.mrb[0].mxu0
      %v790 = vadd.f32 %v493, %v789
      %v791 = vpop.f32.mrb[0].mxu0
      %v792 = vpop.f32.mrb[0].mxu0
      %v793 = vadd.f32 %v496, %v792
      %v794 = vpop.f32.mrb[0].mxu0
      %795 = vmatprep.mubr.bf16.mxu0 0
      %796 = vmatmul.mubr.bf16.gmra.mrb[0].mxu0 %v708
      %v797 = vpop.f32.mrb[0].mxu0
      %v798 = vadd.f32 %v501, %v797
      %v799 = vpop.f32.mrb[0].mxu0
      %v800 = vpop.f32.mrb[0].mxu0
      %v801 = vadd.f32 %v504, %v800
      %v802 = vpop.f32.mrb[0].mxu0
      %803 = vmatprep.mubr.bf16.mxu0 0
      %804 = vmatmul.mubr.bf16.gmra.mrb[0].mxu0 %v711
      %v805 = vpop.f32.mrb[0].mxu0
      %v806 = vadd.f32 %v509, %v805
      %v807 = vpop.f32.mrb[0].mxu0
      %v808 = vpop.f32.mrb[0].mxu0
      %v809 = vadd.f32 %v512, %v808
      %v810 = vpop.f32.mrb[0].mxu0
      %811 = vmatprep.mubr.bf16.mxu0 0
      %812 = vmatmul.mubr.bf16.gmra.mrb[0].mxu0 %v714
      %v813 = vpop.f32.mrb[0].mxu0
      %v814 = vadd.f32 %v517, %v813
      %v815 = vpop.f32.mrb[0].mxu0
      %v816 = vpop.f32.mrb[0].mxu0
      %v817 = vadd.f32 %v520, %v816
      %v818 = vpop.f32.mrb[0].mxu0
      %819 = vmatprep.mubr.bf16.mxu0 0
      %820 = vmatmul.mubr.bf16.gmra.mrb[0].mxu0 %v717
      %v821 = vpop.f32.mrb[0].mxu0
      %v822 = vadd.f32 %v525, %v821
      %v823 = vpop.f32.mrb[0].mxu0
      %v824 = vpop.f32.mrb[0].mxu0
      %v825 = vadd.f32 %v528, %v824
      %v826 = vpop.f32.mrb[0].mxu0
      %827 = vmatprep.mubr.bf16.mxu0 0
      %828 = vmatmul.mubr.bf16.gmra.mrb[0].mxu0 %v720
      %v829 = vpop.f32.mrb[0].mxu0
      %v830 = vadd.f32 %v533, %v829
      %v831 = vpop.f32.mrb[0].mxu0
      %v832 = vpop.f32.mrb[0].mxu0
      %v833 = vadd.f32 %v536, %v832
      %v834 = vpop.f32.mrb[0].mxu0
      %835 = vmatprep.mubr.bf16.mxu0 0
      %836 = vmatmul.mubr.bf16.gmra.mrb[0].mxu0 %v723
      %v837 = vpop.f32.mrb[0].mxu0
      %v838 = vadd.f32 %v541, %v837
      %v839 = vpop.f32.mrb[0].mxu0
      %v840 = vpop.f32.mrb[0].mxu0
      %v841 = vadd.f32 %v544, %v840
      %v842 = vpop.f32.mrb[0].mxu0
      %843 = vmatprep.mubr.bf16.mxu0 0
      %844 = vmatmul.mubr.bf16.gmra.mrb[0].mxu0 %v726
      %v845 = vpop.f32.mrb[0].mxu0
      %v846 = vadd.f32 %v549, %v845
      %v847 = vpop.f32.mrb[0].mxu0
      %v848 = vpop.f32.mrb[0].mxu0
      %v849 = vadd.f32 %v552, %v848
      %v850 = vpop.f32.mrb[0].mxu0
      %851 = vmatprep.mubr.bf16.mxu0 0
      %852 = vmatmul.mubr.bf16.gmra.mrb[0].mxu0 %v729
      %v853 = vpop.f32.mrb[0].mxu0
      %v854 = vadd.f32 %v557, %v853
      %v855 = vpop.f32.mrb[0].mxu0
      %v856 = vpop.f32.mrb[0].mxu0
      %v857 = vadd.f32 %v560, %v856
      %v858 = vpop.f32.mrb[0].mxu0
      %859 = vmatprep.mubr.bf16.mxu0 0
      %860 = vmatmul.mubr.bf16.gmra.mrb[0].mxu0 %v732
      %v861 = vpop.f32.mrb[0].mxu0
      %v862 = vadd.f32 %v565, %v861
      %v863 = vpop.f32.mrb[0].mxu0
      %v864 = vpop.f32.mrb[0].mxu0
      %v865 = vadd.f32 %v568, %v864
      %v866 = vpop.f32.mrb[0].mxu0
      %867 = vmatprep.mubr.bf16.mxu0 0
      %868 = vmatmul.mubr.bf16.gmra.mrb[0].mxu0 %v735
      %v869 = vpop.f32.mrb[0].mxu0
      %v870 = vadd.f32 %v573, %v869
      %v871 = vpop.f32.mrb[0].mxu0
      %v872 = vpop.f32.mrb[0].mxu0
      %v873 = vadd.f32 %v576, %v872
      %v874 = vpop.f32.mrb[0].mxu0
      %875 = vmatprep.mubr.bf16.mxu0 0
      %876 = vmatmul.mubr.bf16.gmra.mrb[0].mxu0 %v738
      %v877 = vpop.f32.mrb[0].mxu0
      %v878 = vadd.f32 %v581, %v877
      %v879 = vpop.f32.mrb[0].mxu0
      %v880 = vpop.f32.mrb[0].mxu0
      %v881 = vadd.f32 %v584, %v880
      %v882 = vpop.f32.mrb[0].mxu0
      %883 = vmatprep.mubr.bf16.mxu0 0
      %884 = vmatmul.mubr.bf16.gmra.mrb[0].mxu0 %v741
      %v885 = vpop.f32.mrb[0].mxu0
      %v886 = vadd.f32 %v589, %v885
      %v887 = vpop.f32.mrb[0].mxu0
      %v888 = vpop.f32.mrb[0].mxu0
      %v889 = vadd.f32 %v592, %v888
      %v890 = vpop.f32.mrb[0].mxu0
      %891 = vmatprep.mubr.bf16.mxu0 0
      %892 = vmatmul.mubr.bf16.gmra.mrb[0].mxu0 %v744
      %v893 = vpop.f32.mrb[0].mxu0
      %v894 = vadd.f32 %v597, %v893
      %v895 = vpop.f32.mrb[0].mxu0
      %v896 = vpop.f32.mrb[0].mxu0
      %v897 = vadd.f32 %v600, %v896
      %v898 = vpop.f32.mrb[0].mxu0
      %899 = vmatprep.mubr.bf16.mxu0 0
      %900 = vmatmul.mubr.bf16.gmra.mrb[0].mxu0 %v747
      %v901 = vpop.f32.mrb[0].mxu0
      %v902 = vadd.f32 %v605, %v901
      %v903 = vpop.f32.mrb[0].mxu0
      %v904 = vpop.f32.mrb[0].mxu0
      %v905 = vadd.f32 %v608, %v904
      %v906 = vpop.f32.mrb[0].mxu0
      %907 = vmatprep.mubr.bf16.mxu0 0
      %908 = vmatmul.mubr.bf16.gmra.mrb[0].mxu0 %v750
      %v909 = vpop.f32.mrb[0].mxu0
      %v910 = vadd.f32 %v613, %v909
      %v911 = vpop.f32.mrb[0].mxu0
      %v912 = vpop.f32.mrb[0].mxu0
      %v913 = vadd.f32 %v616, %v912
      %v914 = vpop.f32.mrb[0].mxu0
      %915 = vdwg.mxu0
      %s916 = sadd.s32 %s243, 2
      %s917 = smul.u32 %s916, 2
      %s918 = smul.addr %s917, 4
      %s919 = scalar_lea.vmem %s223, %s918
      %v920 = vld [vmem:[%s919] sm:$0xf]
      %v921 = vld [vmem:[%s919 + $0x4] sm:$0xf]
      %v922 = vld [vmem:[%s919 + $0x8] sm:$0xf]
      %v923 = vld [vmem:[%s919 + $0xc] sm:$0xf]
      %v924 = vld [vmem:[%s919 + $0x10] sm:$0xf]
      %v925 = vld [vmem:[%s919 + $0x14] sm:$0xf]
      %v926 = vld [vmem:[%s919 + $0x18] sm:$0xf]
      %v927 = vld [vmem:[%s919 + $0x1c] sm:$0xf]
      %v928 = vld [vmem:[%s919 + $0x20] sm:$0xf]
      %v929 = vld [vmem:[%s919 + $0x24] sm:$0xf]
      %v930 = vld [vmem:[%s919 + $0x28] sm:$0xf]
      %v931 = vld [vmem:[%s919 + $0x2c] sm:$0xf]
      %v932 = vld [vmem:[%s919 + $0x30] sm:$0xf]
      %v933 = vld [vmem:[%s919 + $0x34] sm:$0xf]
      %v934 = vld [vmem:[%s919 + $0x38] sm:$0xf]
      %v935 = vld [vmem:[%s919 + $0x3c] sm:$0xf]
      %v936 = vld [vmem:[%s919 + $0x40] sm:$0xf]
      %v937 = vld [vmem:[%s919 + $0x44] sm:$0xf]
      %v938 = vld [vmem:[%s919 + $0x48] sm:$0xf]
      %v939 = vld [vmem:[%s919 + $0x4c] sm:$0xf]
      %v940 = vld [vmem:[%s919 + $0x50] sm:$0xf]
      %v941 = vld [vmem:[%s919 + $0x54] sm:$0xf]
      %v942 = vld [vmem:[%s919 + $0x58] sm:$0xf]
      %v943 = vld [vmem:[%s919 + $0x5c] sm:$0xf]
      %v944 = vld [vmem:[%s919 + $0x60] sm:$0xf]
      %v945 = vld [vmem:[%s919 + $0x64] sm:$0xf]
      %v946 = vld [vmem:[%s919 + $0x68] sm:$0xf]
      %v947 = vld [vmem:[%s919 + $0x6c] sm:$0xf]
      %v948 = vld [vmem:[%s919 + $0x70] sm:$0xf]
      %v949 = vld [vmem:[%s919 + $0x74] sm:$0xf]
      %v950 = vld [vmem:[%s919 + $0x78] sm:$0xf]
      %v951 = vld [vmem:[%s919 + $0x7c] sm:$0xf]
      %s952 = scalar_lea.vmem %s1, 16
      %v953 = vld [vmem:[%s952] sm:$0xf]
      %v954 = vld [vmem:[%s952 + $0x4] sm:$0x3]
      %v987 = vunpack.c.l.b16 %v920
      %v988 = vunpack.c.l.b16 %v921
      %v989 = vunpack.c.l.b16 %v922
      %v990 = vunpack.c.l.b16 %v923
      %v991 = vunpack.c.l.b16 %v924
      %v992 = vunpack.c.l.b16 %v925
      %v993 = vunpack.c.l.b16 %v926
      %v994 = vunpack.c.l.b16 %v927
      %v995 = vunpack.c.l.b16 %v928
      %v996 = vunpack.c.l.b16 %v929
      %v997 = vunpack.c.l.b16 %v930
      %v998 = vunpack.c.l.b16 %v931
      %v999 = vunpack.c.l.b16 %v932
      %v1000 = vunpack.c.l.b16 %v933
      %v1001 = vunpack.c.l.b16 %v934
      %v1002 = vunpack.c.l.b16 %v935
      %v1003 = vunpack.c.l.b16 %v936
      %v1004 = vunpack.c.l.b16 %v937
      %v1005 = vunpack.c.l.b16 %v938
      %v1006 = vunpack.c.l.b16 %v939
      %v1007 = vunpack.c.l.b16 %v940
      %v1008 = vunpack.c.l.b16 %v941
      %v1009 = vunpack.c.l.b16 %v942
      %v1010 = vunpack.c.l.b16 %v943
      %v1011 = vunpack.c.l.b16 %v944
      %v1012 = vunpack.c.l.b16 %v945
      %v1013 = vunpack.c.l.b16 %v946
      %v1014 = vunpack.c.l.b16 %v947
      %v1015 = vunpack.c.l.b16 %v948
      %v1016 = vunpack.c.l.b16 %v949
      %v1017 = vunpack.c.l.b16 %v950
      %v1018 = vunpack.c.l.b16 %v951
      %v1019 = vpack.c.b16 %v988, %v987
      %v1020 = vpack.c.b16 %v990, %v989
      %v1021 = vpack.c.b16 %v992, %v991
      %v1022 = vpack.c.b16 %v994, %v993
      %v1023 = vpack.c.b16 %v996, %v995
      %v1024 = vpack.c.b16 %v998, %v997
      %v1025 = vpack.c.b16 %v1000, %v999
      %v1026 = vpack.c.b16 %v1002, %v1001
      %v1027 = vpack.c.b16 %v1004, %v1003
      %v1028 = vpack.c.b16 %v1006, %v1005
      %v1029 = vpack.c.b16 %v1008, %v1007
      %v1030 = vpack.c.b16 %v1010, %v1009
      %v1031 = vpack.c.b16 %v1012, %v1011
      %v1032 = vpack.c.b16 %v1014, %v1013
      %v1033 = vpack.c.b16 %v1016, %v1015
      %v1034 = vpack.c.b16 %v1018, %v1017
      %v1037 = vunpack.c.l.b16 %v953
      %v1038 = vunpack.c.l.b16 %v954
      %v1039 = vpack.c.b16 %v1038, %v1037
      %v1041 = vsel %vm405, %v1019, 0
      %v1044 = vsel %vm405, %v1020, 0
      %v1047 = vsel %vm405, %v1021, 0
      %v1050 = vsel %vm405, %v1022, 0
      %v1053 = vsel %vm405, %v1023, 0
      %v1056 = vsel %vm405, %v1024, 0
      %v1059 = vsel %vm405, %v1025, 0
      %v1062 = vsel %vm405, %v1026, 0
      %v1065 = vsel %vm405, %v1027, 0
      %v1068 = vsel %vm405, %v1028, 0
      %v1071 = vsel %vm405, %v1029, 0
      %v1074 = vsel %vm405, %v1030, 0
      %v1077 = vsel %vm405, %v1031, 0
      %v1080 = vsel %vm405, %v1032, 0
      %v1083 = vsel %vm405, %v1033, 0
      %v1086 = vsel %vm405, %v1034, 0
      %v1089 = vsel %vm454, %v1039, 0
      %1091 = vmatprep.subr.bf16.mxu0 0
      %1092 = vmatpush1.bf16.msra.mxu0 %v1089
      %1093 = vmatprep.subr.bf16.mxu0 0
      %1094 = vmatpush1.bf16.msra.mxu0 0
      %1095 = vmatprep.subr.bf16.mxu0 0
      %1096 = vmatpush1.bf16.msra.mxu0 0
      %1097 = vmatprep.subr.bf16.mxu0 0
      %1098 = vmatpush1.bf16.msra.mxu0 0
      %1099 = vmatprep.subr.bf16.mxu0 0
      %1100 = vmatpush1.bf16.msra.mxu0 0
      %1101 = vmatprep.subr.bf16.mxu0 0
      %1102 = vmatpush1.bf16.msra.mxu0 0
      %1103 = vmatprep.subr.bf16.mxu0 0
      %1104 = vmatpush1.bf16.msra.mxu0 0
      %1105 = vmatprep.subr.bf16.mxu0 0
      %1106 = vmatpush1.bf16.msra.mxu0 0
      %1107 = vmatprep.subr.bf16.mxu0 0
      %1108 = vmatpush1.bf16.msra.mxu0 0
      %1109 = vmatprep.subr.bf16.mxu0 0
      %1110 = vmatpush1.bf16.msra.mxu0 0
      %1111 = vmatprep.subr.bf16.mxu0 0
      %1112 = vmatpush1.bf16.msra.mxu0 0
      %1113 = vmatprep.subr.bf16.mxu0 0
      %1114 = vmatpush1.bf16.msra.mxu0 0
      %1115 = vmatprep.subr.bf16.mxu0 0
      %1116 = vmatpush1.bf16.msra.mxu0 0
      %1117 = vmatprep.subr.bf16.mxu0 0
      %1118 = vmatpush1.bf16.msra.mxu0 0
      %1119 = vmatprep.subr.bf16.mxu0 0
      %1120 = vmatpush1.bf16.msra.mxu0 0
      %1121 = vmatprep.subr.bf16.mxu0 0
      %1122 = vmatpush1.bf16.msra.mxu0 0
      %1123 = vmatprep.mubr.bf16.mxu0 0
      %1124 = vmatmul.mubr.bf16.gmra.mrb[0].mxu0 %v1041
      %v1125 = vpop.f32.mrb[0].mxu0
      %v1126 = vadd.f32 0.0, %v1125
      %v1127 = vpop.f32.mrb[0].mxu0
      %v1128 = vpop.f32.mrb[0].mxu0
      %v1129 = vadd.f32 0.0, %v1128
      %v1130 = vpop.f32.mrb[0].mxu0
      %1131 = vmatprep.mubr.bf16.mxu0 0
      %1132 = vmatmul.mubr.bf16.gmra.mrb[0].mxu0 %v1044
      %v1133 = vpop.f32.mrb[0].mxu0
      %v1134 = vadd.f32 0.0, %v1133
      %v1135 = vpop.f32.mrb[0].mxu0
      %v1136 = vpop.f32.mrb[0].mxu0
      %v1137 = vadd.f32 0.0, %v1136
      %v1138 = vpop.f32.mrb[0].mxu0
      %1139 = vmatprep.mubr.bf16.mxu0 0
      %1140 = vmatmul.mubr.bf16.gmra.mrb[0].mxu0 %v1047
      %v1141 = vpop.f32.mrb[0].mxu0
      %v1142 = vadd.f32 0.0, %v1141
      %v1143 = vpop.f32.mrb[0].mxu0
      %v1144 = vpop.f32.mrb[0].mxu0
      %v1145 = vadd.f32 0.0, %v1144
      %v1146 = vpop.f32.mrb[0].mxu0
      %1147 = vmatprep.mubr.bf16.mxu0 0
      %1148 = vmatmul.mubr.bf16.gmra.mrb[0].mxu0 %v1050
      %v1149 = vpop.f32.mrb[0].mxu0
      %v1150 = vadd.f32 0.0, %v1149
      %v1151 = vpop.f32.mrb[0].mxu0
      %v1152 = vpop.f32.mrb[0].mxu0
      %v1153 = vadd.f32 0.0, %v1152
      %v1154 = vpop.f32.mrb[0].mxu0
      %1155 = vmatprep.mubr.bf16.mxu0 0
      %1156 = vmatmul.mubr.bf16.gmra.mrb[0].mxu0 %v1053
      %v1157 = vpop.f32.mrb[0].mxu0
      %v1158 = vadd.f32 0.0, %v1157
      %v1159 = vpop.f32.mrb[0].mxu0
      %v1160 = vpop.f32.mrb[0].mxu0
      %v1161 = vadd.f32 0.0, %v1160
      %v1162 = vpop.f32.mrb[0].mxu0
      %1163 = vmatprep.mubr.bf16.mxu0 0
      %1164 = vmatmul.mubr.bf16.gmra.mrb[0].mxu0 %v1056
      %v1165 = vpop.f32.mrb[0].mxu0
      %v1166 = vadd.f32 0.0, %v1165
      %v1167 = vpop.f32.mrb[0].mxu0
      %v1168 = vpop.f32.mrb[0].mxu0
      %v1169 = vadd.f32 0.0, %v1168
      %v1170 = vpop.f32.mrb[0].mxu0
      %1171 = vmatprep.mubr.bf16.mxu0 0
      %1172 = vmatmul.mubr.bf16.gmra.mrb[0].mxu0 %v1059
      %v1173 = vpop.f32.mrb[0].mxu0
      %v1174 = vadd.f32 0.0, %v1173
      %v1175 = vpop.f32.mrb[0].mxu0
      %v1176 = vpop.f32.mrb[0].mxu0
      %v1177 = vadd.f32 0.0, %v1176
      %v1178 = vpop.f32.mrb[0].mxu0
      %1179 = vmatprep.mubr.bf16.mxu0 0
      %1180 = vmatmul.mubr.bf16.gmra.mrb[0].mxu0 %v1062
      %v1181 = vpop.f32.mrb[0].mxu0
      %v1182 = vadd.f32 0.0, %v1181
      %v1183 = vpop.f32.mrb[0].mxu0
      %v1184 = vpop.f32.mrb[0].mxu0
      %v1185 = vadd.f32 0.0, %v1184
      %v1186 = vpop.f32.mrb[0].mxu0
      %1187 = vmatprep.mubr.bf16.mxu0 0
      %1188 = vmatmul.mubr.bf16.gmra.mrb[0].mxu0 %v1065
      %v1189 = vpop.f32.mrb[0].mxu0
      %v1190 = vadd.f32 0.0, %v1189
      %v1191 = vpop.f32.mrb[0].mxu0
      %v1192 = vpop.f32.mrb[0].mxu0
      %v1193 = vadd.f32 0.0, %v1192
      %v1194 = vpop.f32.mrb[0].mxu0
      %1195 = vmatprep.mubr.bf16.mxu0 0
      %1196 = vmatmul.mubr.bf16.gmra.mrb[0].mxu0 %v1068
      %v1197 = vpop.f32.mrb[0].mxu0
      %v1198 = vadd.f32 0.0, %v1197
      %v1199 = vpop.f32.mrb[0].mxu0
      %v1200 = vpop.f32.mrb[0].mxu0
      %v1201 = vadd.f32 0.0, %v1200
      %v1202 = vpop.f32.mrb[0].mxu0
      %1203 = vmatprep.mubr.bf16.mxu0 0
      %1204 = vmatmul.mubr.bf16.gmra.mrb[0].mxu0 %v1071
      %v1205 = vpop.f32.mrb[0].mxu0
      %v1206 = vadd.f32 0.0, %v1205
      %v1207 = vpop.f32.mrb[0].mxu0
      %v1208 = vpop.f32.mrb[0].mxu0
      %v1209 = vadd.f32 0.0, %v1208
      %v1210 = vpop.f32.mrb[0].mxu0
      %1211 = vmatprep.mubr.bf16.mxu0 0
      %1212 = vmatmul.mubr.bf16.gmra.mrb[0].mxu0 %v1074
      %v1213 = vpop.f32.mrb[0].mxu0
      %v1214 = vadd.f32 0.0, %v1213
      %v1215 = vpop.f32.mrb[0].mxu0
      %v1216 = vpop.f32.mrb[0].mxu0
      %v1217 = vadd.f32 0.0, %v1216
      %v1218 = vpop.f32.mrb[0].mxu0
      %1219 = vmatprep.mubr.bf16.mxu0 0
      %1220 = vmatmul.mubr.bf16.gmra.mrb[0].mxu0 %v1077
      %v1221 = vpop.f32.mrb[0].mxu0
      %v1222 = vadd.f32 0.0, %v1221
      %v1223 = vpop.f32.mrb[0].mxu0
      %v1224 = vpop.f32.mrb[0].mxu0
      %v1225 = vadd.f32 0.0, %v1224
      %v1226 = vpop.f32.mrb[0].mxu0
      %1227 = vmatprep.mubr.bf16.mxu0 0
      %1228 = vmatmul.mubr.bf16.gmra.mrb[0].mxu0 %v1080
      %v1229 = vpop.f32.mrb[0].mxu0
      %v1230 = vadd.f32 0.0, %v1229
      %v1231 = vpop.f32.mrb[0].mxu0
      %v1232 = vpop.f32.mrb[0].mxu0
      %v1233 = vadd.f32 0.0, %v1232
      %v1234 = vpop.f32.mrb[0].mxu0
      %1235 = vmatprep.mubr.bf16.mxu0 0
      %1236 = vmatmul.mubr.bf16.gmra.mrb[0].mxu0 %v1083
      %v1237 = vpop.f32.mrb[0].mxu0
      %v1238 = vadd.f32 0.0, %v1237
      %v1239 = vpop.f32.mrb[0].mxu0
      %v1240 = vpop.f32.mrb[0].mxu0
      %v1241 = vadd.f32 0.0, %v1240
      %v1242 = vpop.f32.mrb[0].mxu0
      %1243 = vmatprep.mubr.bf16.mxu0 0
      %1244 = vmatmul.mubr.bf16.gmra.mrb[0].mxu0 %v1086
      %v1245 = vpop.f32.mrb[0].mxu0
      %v1246 = vadd.f32 0.0, %v1245
      %v1247 = vpop.f32.mrb[0].mxu0
      %v1248 = vpop.f32.mrb[0].mxu0
      %v1249 = vadd.f32 0.0, %v1248
      %v1250 = vpop.f32.mrb[0].mxu0
      %1251 = vdwg.mxu0
      %v1252 = vadd.f32 %v790, %v1126
      %v1253 = vadd.f32 %v793, %v1129
      %v1254 = vadd.f32 %v798, %v1134
      %v1255 = vadd.f32 %v801, %v1137
      %v1256 = vadd.f32 %v806, %v1142
      %v1257 = vadd.f32 %v809, %v1145
      %v1258 = vadd.f32 %v814, %v1150
      %v1259 = vadd.f32 %v817, %v1153
      %v1260 = vadd.f32 %v822, %v1158
      %v1261 = vadd.f32 %v825, %v1161
      %v1262 = vadd.f32 %v830, %v1166
      %v1263 = vadd.f32 %v833, %v1169
      %v1264 = vadd.f32 %v838, %v1174
      %v1265 = vadd.f32 %v841, %v1177
      %v1266 = vadd.f32 %v846, %v1182
      %v1267 = vadd.f32 %v849, %v1185
      %v1268 = vadd.f32 %v854, %v1190
      %v1269 = vadd.f32 %v857, %v1193
      %v1270 = vadd.f32 %v862, %v1198
      %v1271 = vadd.f32 %v865, %v1201
      %v1272 = vadd.f32 %v870, %v1206
      %v1273 = vadd.f32 %v873, %v1209
      %v1274 = vadd.f32 %v878, %v1214
      %v1275 = vadd.f32 %v881, %v1217
      %v1276 = vadd.f32 %v886, %v1222
      %v1277 = vadd.f32 %v889, %v1225
      %v1278 = vadd.f32 %v894, %v1230
      %v1279 = vadd.f32 %v897, %v1233
      %v1280 = vadd.f32 %v902, %v1238
      %v1281 = vadd.f32 %v905, %v1241
      %v1282 = vadd.f32 %v910, %v1246
      %v1283 = vadd.f32 %v913, %v1249
      %v1284 = vld [vmem:[%s2] sm:$0x1]
      %v1286 = vlaneseq
      %v1287 = vshrl.u32 %v1286, 7
      %v1288 = vsub.s32 0, %v1287
      %v1289 = vrot.slane %v1284, %v1288
      %v1291 = vadd.f32 %v1252, %v1289
      %v1292 = vadd.f32 %v1253, %v1289
      %v1293 = vadd.f32 %v1254, %v1289
      %v1294 = vadd.f32 %v1255, %v1289
      %v1295 = vadd.f32 %v1256, %v1289
      %v1296 = vadd.f32 %v1257, %v1289
      %v1297 = vadd.f32 %v1258, %v1289
      %v1298 = vadd.f32 %v1259, %v1289
      %v1299 = vadd.f32 %v1260, %v1289
      %v1300 = vadd.f32 %v1261, %v1289
      %v1301 = vadd.f32 %v1262, %v1289
      %v1302 = vadd.f32 %v1263, %v1289
      %v1303 = vadd.f32 %v1264, %v1289
      %v1304 = vadd.f32 %v1265, %v1289
      %v1305 = vadd.f32 %v1266, %v1289
      %v1306 = vadd.f32 %v1267, %v1289
      %v1307 = vadd.f32 %v1268, %v1289
      %v1308 = vadd.f32 %v1269, %v1289
      %v1309 = vadd.f32 %v1270, %v1289
      %v1310 = vadd.f32 %v1271, %v1289
      %v1311 = vadd.f32 %v1272, %v1289
      %v1312 = vadd.f32 %v1273, %v1289
      %v1313 = vadd.f32 %v1274, %v1289
      %v1314 = vadd.f32 %v1275, %v1289
      %v1315 = vadd.f32 %v1276, %v1289
      %v1316 = vadd.f32 %v1277, %v1289
      %v1317 = vadd.f32 %v1278, %v1289
      %v1318 = vadd.f32 %v1279, %v1289
      %v1319 = vadd.f32 %v1280, %v1289
      %v1320 = vadd.f32 %v1281, %v1289
      %v1321 = vadd.f32 %v1282, %v1289
      %v1322 = vadd.f32 %v1283, %v1289
      %1323 = vst [vmem:[%s233] sm:$0xff] %v1291
      %1324 = vst [vmem:[%s233 + $0x8] sm:$0xff] %v1292
      %1325 = vst [vmem:[%s233 + $0x10] sm:$0xff] %v1293
      %1326 = vst [vmem:[%s233 + $0x18] sm:$0xff] %v1294
      %1327 = vst [vmem:[%s233 + $0x20] sm:$0xff] %v1295
      %1328 = vst [vmem:[%s233 + $0x28] sm:$0xff] %v1296
      %1329 = vst [vmem:[%s233 + $0x30] sm:$0xff] %v1297
      %1330 = vst [vmem:[%s233 + $0x38] sm:$0xff] %v1298
      %1331 = vst [vmem:[%s233 + $0x40] sm:$0xff] %v1299
      %1332 = vst [vmem:[%s233 + $0x48] sm:$0xff] %v1300
      %1333 = vst [vmem:[%s233 + $0x50] sm:$0xff] %v1301
      %1334 = vst [vmem:[%s233 + $0x58] sm:$0xff] %v1302
      %1335 = vst [vmem:[%s233 + $0x60] sm:$0xff] %v1303
      %1336 = vst [vmem:[%s233 + $0x68] sm:$0xff] %v1304
      %1337 = vst [vmem:[%s233 + $0x70] sm:$0xff] %v1305
      %1338 = vst [vmem:[%s233 + $0x78] sm:$0xff] %v1306
      %1339 = vst [vmem:[%s233 + $0x80] sm:$0xff] %v1307
      %1340 = vst [vmem:[%s233 + $0x88] sm:$0xff] %v1308
      %1341 = vst [vmem:[%s233 + $0x90] sm:$0xff] %v1309
      %1342 = vst [vmem:[%s233 + $0x98] sm:$0xff] %v1310
      %1343 = vst [vmem:[%s233 + $0xa0] sm:$0xff] %v1311
      %1344 = vst [vmem:[%s233 + $0xa8] sm:$0xff] %v1312
      %1345 = vst [vmem:[%s233 + $0xb0] sm:$0xff] %v1313
      %1346 = vst [vmem:[%s233 + $0xb8] sm:$0xff] %v1314
      %1347 = vst [vmem:[%s233 + $0xc0] sm:$0xff] %v1315
      %1348 = vst [vmem:[%s233 + $0xc8] sm:$0xff] %v1316
      %1349 = vst [vmem:[%s233 + $0xd0] sm:$0xff] %v1317
      %1350 = vst [vmem:[%s233 + $0xd8] sm:$0xff] %v1318
      %1351 = vst [vmem:[%s233 + $0xe0] sm:$0xff] %v1319
      %1352 = vst [vmem:[%s233 + $0xe8] sm:$0xff] %v1320
      %1353 = vst [vmem:[%s233 + $0xf0] sm:$0xff] %v1321
      %1354 = vst [vmem:[%s233 + $0xf8] sm:$0xff] %v1322
      %v1355 = vstv %s243
      %v1356 = vadd.s32 %v1355, 1
      %v1357 = vadd.s32 %v1355, 2
      %v1358 = vadd.s32 %v1355, 3
      %v1359 = vadd.s32 %v1355, 4
      %v1360 = vadd.s32 %v1355, 5
      %v1361 = vadd.s32 %v1355, 6
      %v1362 = vadd.s32 %v1355, 7
      %v1363 = vadd.s32 %v1355, 8
      %v1364 = vadd.s32 %v1355, 9
      %v1365 = vadd.s32 %v1355, 10
      %v1366 = vadd.s32 %v1355, 11
      %v1367 = vadd.s32 %v1355, 12
      %v1368 = vadd.s32 %v1355, 13
      %v1369 = vadd.s32 %v1355, 14
      %v1370 = vadd.s32 %v1355, 15
      %vm1371 = vcmp.lt.s32.totalorder %v1355, 16
      %vm1372 = vcmp.lt.s32.totalorder %v1356, 16
      %vm1373 = vcmp.lt.s32.totalorder %v1357, 16
      %vm1374 = vcmp.lt.s32.totalorder %v1358, 16
      %vm1375 = vcmp.lt.s32.totalorder %v1359, 16
      %vm1376 = vcmp.lt.s32.totalorder %v1360, 16
      %vm1377 = vcmp.lt.s32.totalorder %v1361, 16
      %vm1378 = vcmp.lt.s32.totalorder %v1362, 16
      %vm1379 = vcmp.lt.s32.totalorder %v1363, 16
      %vm1380 = vcmp.lt.s32.totalorder %v1364, 16
      %vm1381 = vcmp.lt.s32.totalorder %v1365, 16
      %vm1382 = vcmp.lt.s32.totalorder %v1366, 16
      %vm1383 = vcmp.lt.s32.totalorder %v1367, 16
      %vm1384 = vcmp.lt.s32.totalorder %v1368, 16
      %vm1385 = vcmp.lt.s32.totalorder %v1369, 16
      %vm1386 = vcmp.lt.s32.totalorder %v1370, 16
      %v1387 = vsel %vm1371, 1, 0
      %v1388 = vsel %vm1372, 1, 0
      %v1389 = vsel %vm1373, 1, 0
      %v1390 = vsel %vm1374, 1, 0
      %v1391 = vsel %vm1375, 1, 0
      %v1392 = vsel %vm1376, 1, 0
      %v1393 = vsel %vm1377, 1, 0
      %v1394 = vsel %vm1378, 1, 0
      %v1395 = vsel %vm1379, 1, 0
      %v1396 = vsel %vm1380, 1, 0
      %v1397 = vsel %vm1381, 1, 0
      %v1398 = vsel %vm1382, 1, 0
      %v1399 = vsel %vm1383, 1, 0
      %v1400 = vsel %vm1384, 1, 0
      %v1401 = vsel %vm1385, 1, 0
      %v1402 = vsel %vm1386, 1, 0
      %vm1403 = vcmp.eq.s32.totalorder %v1387, 1
      %vm1404 = vcmp.eq.s32.totalorder %v1388, 1
      %vm1405 = vcmp.eq.s32.totalorder %v1389, 1
      %vm1406 = vcmp.eq.s32.totalorder %v1390, 1
      %vm1407 = vcmp.eq.s32.totalorder %v1391, 1
      %vm1408 = vcmp.eq.s32.totalorder %v1392, 1
      %vm1409 = vcmp.eq.s32.totalorder %v1393, 1
      %vm1410 = vcmp.eq.s32.totalorder %v1394, 1
      %vm1411 = vcmp.eq.s32.totalorder %v1395, 1
      %vm1412 = vcmp.eq.s32.totalorder %v1396, 1
      %vm1413 = vcmp.eq.s32.totalorder %v1397, 1
      %vm1414 = vcmp.eq.s32.totalorder %v1398, 1
      %vm1415 = vcmp.eq.s32.totalorder %v1399, 1
      %vm1416 = vcmp.eq.s32.totalorder %v1400, 1
      %vm1417 = vcmp.eq.s32.totalorder %v1401, 1
      %vm1418 = vcmp.eq.s32.totalorder %v1402, 1
      %v1419 = vsel %vm1403, %v1291, 0.0
      %v1420 = vsel %vm1403, %v1292, 0.0
      %v1421 = vsel %vm1404, %v1293, 0.0
      %v1422 = vsel %vm1404, %v1294, 0.0
      %v1423 = vsel %vm1405, %v1295, 0.0
      %v1424 = vsel %vm1405, %v1296, 0.0
      %v1425 = vsel %vm1406, %v1297, 0.0
      %v1426 = vsel %vm1406, %v1298, 0.0
      %v1427 = vsel %vm1407, %v1299, 0.0
      %v1428 = vsel %vm1407, %v1300, 0.0
      %v1429 = vsel %vm1408, %v1301, 0.0
      %v1430 = vsel %vm1408, %v1302, 0.0
      %v1431 = vsel %vm1409, %v1303, 0.0
      %v1432 = vsel %vm1409, %v1304, 0.0
      %v1433 = vsel %vm1410, %v1305, 0.0
      %v1434 = vsel %vm1410, %v1306, 0.0
      %v1435 = vsel %vm1411, %v1307, 0.0
      %v1436 = vsel %vm1411, %v1308, 0.0
      %v1437 = vsel %vm1412, %v1309, 0.0
      %v1438 = vsel %vm1412, %v1310, 0.0
      %v1439 = vsel %vm1413, %v1311, 0.0
      %v1440 = vsel %vm1413, %v1312, 0.0
      %v1441 = vsel %vm1414, %v1313, 0.0
      %v1442 = vsel %vm1414, %v1314, 0.0
      %v1443 = vsel %vm1415, %v1315, 0.0
      %v1444 = vsel %vm1415, %v1316, 0.0
      %v1445 = vsel %vm1416, %v1317, 0.0
      %v1446 = vsel %vm1416, %v1318, 0.0
      %v1447 = vsel %vm1417, %v1319, 0.0
      %v1448 = vsel %vm1417, %v1320, 0.0
      %v1449 = vsel %vm1418, %v1321, 0.0
      %v1450 = vsel %vm1418, %v1322, 0.0
      %v1451 = vadd.f32 %v1419, %v1420
      %v1452 = vadd.f32 %v1451, %v1421
      %v1453 = vadd.f32 %v1452, %v1422
      %v1454 = vadd.f32 %v1453, %v1423
      %v1455 = vadd.f32 %v1454, %v1424
      %v1456 = vadd.f32 %v1455, %v1425
      %v1457 = vadd.f32 %v1456, %v1426
      %v1458 = vadd.f32 %v1457, %v1427
      %v1459 = vadd.f32 %v1458, %v1428
      %v1460 = vadd.f32 %v1459, %v1429
      %v1461 = vadd.f32 %v1460, %v1430
      %v1462 = vadd.f32 %v1461, %v1431
      %v1463 = vadd.f32 %v1462, %v1432
      %v1464 = vadd.f32 %v1463, %v1433
      %v1465 = vadd.f32 %v1464, %v1434
      %v1466 = vadd.f32 %v1465, %v1435
      %v1467 = vadd.f32 %v1466, %v1436
      %v1468 = vadd.f32 %v1467, %v1437
      %v1469 = vadd.f32 %v1468, %v1438
      %v1470 = vadd.f32 %v1469, %v1439
      %v1471 = vadd.f32 %v1470, %v1440
      %v1472 = vadd.f32 %v1471, %v1441
      %v1473 = vadd.f32 %v1472, %v1442
      %v1474 = vadd.f32 %v1473, %v1443
      %v1475 = vadd.f32 %v1474, %v1444
      %v1476 = vadd.f32 %v1475, %v1445
      %v1477 = vadd.f32 %v1476, %v1446
      %v1478 = vadd.f32 %v1477, %v1447
      %v1479 = vadd.f32 %v1478, %v1448
      %v1480 = vadd.f32 %v1479, %v1449
      %v1481 = vadd.f32 %v1480, %v1450
      %v1482 = vrot.slane %v1481, 4
      %v1483 = vadd.f32 %v1481, %v1482
      %v1484 = vrot.slane %v1483, 2
      %v1485 = vadd.f32 %v1483, %v1484
      %v1486 = vrot.slane %v1485, 1
      %v1487 = vadd.f32 %v1485, %v1486
      %v1488 = vmul.f32 %v1419, %v1291
      %v1489 = vmul.f32 %v1420, %v1292
      %v1490 = vmul.f32 %v1421, %v1293
      %v1491 = vmul.f32 %v1422, %v1294
      %v1492 = vmul.f32 %v1423, %v1295
      %v1493 = vmul.f32 %v1424, %v1296
      %v1494 = vmul.f32 %v1425, %v1297
      %v1495 = vmul.f32 %v1426, %v1298
      %v1496 = vmul.f32 %v1427, %v1299
      %v1497 = vmul.f32 %v1428, %v1300
      %v1498 = vmul.f32 %v1429, %v1301
      %v1499 = vmul.f32 %v1430, %v1302
      %v1500 = vmul.f32 %v1431, %v1303
      %v1501 = vmul.f32 %v1432, %v1304
      %v1502 = vmul.f32 %v1433, %v1305
      %v1503 = vmul.f32 %v1434, %v1306
      %v1504 = vmul.f32 %v1435, %v1307
      %v1505 = vmul.f32 %v1436, %v1308
      %v1506 = vmul.f32 %v1437, %v1309
      %v1507 = vmul.f32 %v1438, %v1310
      %v1508 = vmul.f32 %v1439, %v1311
      %v1509 = vmul.f32 %v1440, %v1312
      %v1510 = vmul.f32 %v1441, %v1313
      %v1511 = vmul.f32 %v1442, %v1314
      %v1512 = vmul.f32 %v1443, %v1315
      %v1513 = vmul.f32 %v1444, %v1316
      %v1514 = vmul.f32 %v1445, %v1317
      %v1515 = vmul.f32 %v1446, %v1318
      %v1516 = vmul.f32 %v1447, %v1319
      %v1517 = vmul.f32 %v1448, %v1320
      %v1518 = vmul.f32 %v1449, %v1321
      %v1519 = vmul.f32 %v1450, %v1322
      %v1520 = vadd.f32 %v1488, %v1489
      %v1521 = vadd.f32 %v1520, %v1490
      %v1522 = vadd.f32 %v1521, %v1491
      %v1523 = vadd.f32 %v1522, %v1492
      %v1524 = vadd.f32 %v1523, %v1493
      %v1525 = vadd.f32 %v1524, %v1494
      %v1526 = vadd.f32 %v1525, %v1495
      %v1527 = vadd.f32 %v1526, %v1496
      %v1528 = vadd.f32 %v1527, %v1497
      %v1529 = vadd.f32 %v1528, %v1498
      %v1530 = vadd.f32 %v1529, %v1499
      %v1531 = vadd.f32 %v1530, %v1500
      %v1532 = vadd.f32 %v1531, %v1501
      %v1533 = vadd.f32 %v1532, %v1502
      %v1534 = vadd.f32 %v1533, %v1503
      %v1535 = vadd.f32 %v1534, %v1504
      %v1536 = vadd.f32 %v1535, %v1505
      %v1537 = vadd.f32 %v1536, %v1506
      %v1538 = vadd.f32 %v1537, %v1507
      %v1539 = vadd.f32 %v1538, %v1508
      %v1540 = vadd.f32 %v1539, %v1509
      %v1541 = vadd.f32 %v1540, %v1510
      %v1542 = vadd.f32 %v1541, %v1511
      %v1543 = vadd.f32 %v1542, %v1512
      %v1544 = vadd.f32 %v1543, %v1513
      %v1545 = vadd.f32 %v1544, %v1514
      %v1546 = vadd.f32 %v1545, %v1515
      %v1547 = vadd.f32 %v1546, %v1516
      %v1548 = vadd.f32 %v1547, %v1517
      %v1549 = vadd.f32 %v1548, %v1518
      %v1550 = vadd.f32 %v1549, %v1519
      %v1551 = vrot.slane %v1550, 4
      %v1552 = vadd.f32 %v1550, %v1551
      %v1553 = vrot.slane %v1552, 2
      %v1554 = vadd.f32 %v1552, %v1553
      %v1555 = vrot.slane %v1554, 1
      %v1556 = vadd.f32 %v1554, %v1555
      %1557 = vst [vmem:[%s241] sm:$0x1] %v1487
      %1558 = vst [vmem:[%s241 + $0x1] sm:$0x1] %v1556
      %s1559 = smul.u32 16, %s21
      %p1560 = scmp.lt.s32.totalorder %s20, 1
      %s1561 = scalar_select %p1560, %s20, 1
      %p1562 = scmp.lt.s32.totalorder %s1559, 15
      %s1563 = scalar_select %p1562, %s1559, 15
      %s1564 = smul.addr %s1563, 2
      %s1565 = smul.addr %s1561, 32
      %s1566 = sadd.s32 %s1564, %s1565
      %s1567 = smul.addr %s1566, 8
      %s1568 = scalar_lea.vmem %s3, %s1567
      %p1569 = scmp.lt.s32.totalorder %s20, 1
      %s1570 = scalar_select %p1569, %s20, 1
      %p1571 = scmp.lt.s32.totalorder %s21, 0
      %s1572 = scalar_select %p1571, %s21, 0
      %s1573 = sadd.s32 %s1572, %s1570
      %s1574 = smul.addr %s1573, 2
      %s1575 = scalar_lea.vmem %s4, %s1574
      // Predicated region
      $region33: #{basic_conv2d.2} parent=31 // pred_check
        %p1576 = pneg %p116
      $region34: #{basic_conv2d.2} parent=31 // pred_check_branch
        %1578 = sbr.rel (%p1576) target = $region36
      $region35: #{basic_conv2d.2} parent=31 // pred_region
        %s1579 = smul.u32 16, %s21
      $region36: #{basic_conv2d.2} parent=31 // pred_fallthru
        _
      // Predicated region
      $region37: #{basic_conv2d.2} parent=31 // pred_check
        %p1580 = pneg %p144
      $region38: #{basic_conv2d.2} parent=31 // pred_check_branch
        %1582 = sbr.rel (%p1580) target = $region40
      $region39: #{basic_conv2d.2} parent=31 // pred_region
        _
      $region40: #{basic_conv2d.2} parent=31 // pred_fallthru
        _
    $region32: #{basic_conv2d.2} parent=5 // pred_fallthru
      _
    %p1583 = scmp.le.s32.totalorder 2, %s11
    // Predicated region
    $region41: #{basic_conv2d.2} parent=5 // pred_check
      %p1584 = pneg %p1583
    $region42: #{basic_conv2d.2} parent=5 // pred_check_branch
      %1586 = sbr.rel (%p1584) target = $region44
    $region43: #{basic_conv2d.2} parent=5 // pred_region
      %s1587 = ssub.s32 %s11, 2
      // Predicated region
      $region45: #{basic_conv2d.2} parent=43 // pred_check
        %p1588 = pneg %p122
      $region46: #{basic_conv2d.2} parent=43 // pred_check_branch
        %1590 = sbr.rel (%p1588) target = $region48
      $region47: #{basic_conv2d.2} parent=43 // pred_region
        %s1591 = smul.u32 16, %s23
        %p1592 = scmp.lt.s32.totalorder %s22, 1
        %s1593 = scalar_select %p1592, %s22, 1
        %p1594 = scmp.lt.s32.totalorder %s1591, 15
        %s1595 = scalar_select %p1594, %s1591, 15
        %s1596 = smul.addr %s1595, 2
        %s1597 = smul.addr %s1593, 32
        %s1598 = sadd.s32 %s1596, %s1597
        %s1599 = smul.addr %s1598, 8
        %s1600 = scalar_lea.vmem %s3, %s1599
      $region48: #{basic_conv2d.2} parent=43 // pred_fallthru
        _
      // Predicated region
      $region49: #{basic_conv2d.2} parent=43 // pred_check
        %p1601 = pneg %p150
      $region50: #{basic_conv2d.2} parent=43 // pred_check_branch
        %1603 = sbr.rel (%p1601) target = $region52
      $region51: #{basic_conv2d.2} parent=43 // pred_region
        %p1604 = scmp.lt.s32.totalorder %s22, 1
        %s1605 = scalar_select %p1604, %s22, 1
        %p1606 = scmp.lt.s32.totalorder %s23, 0
        %s1607 = scalar_select %p1606, %s23, 0
        %s1608 = sadd.s32 %s1607, %s1605
        %s1609 = smul.addr %s1608, 2
        %s1610 = scalar_lea.vmem %s4, %s1609
      $region52: #{basic_conv2d.2} parent=43 // pred_fallthru
        _
    $region44: #{basic_conv2d.2} parent=5 // pred_fallthru
      _
  $region6: #{basic_conv2d.2} parent=0 // loop_footer
    %s15 = sadd.s32 1, %s11
  $region7: #{basic_conv2d.2} parent=0 // loop_footer_branch
    %10 = sbr.rel target = $region3
  $region8: #{basic_conv2d.2} parent=0 // loop_exit
    _

</llo_original>
